<compile_context>
chip_gen: v5e
topology: v5e:2x2
jax: 0.10.0
libtpu: 0.0.40
codegen_flags: <defaults>
</compile_context>

<pallas_src>
import jax
import jax.numpy as jnp
import numpy as np
from jax.experimental import pallas as pl
from jax.experimental.pallas import tpu as pltpu

BN_EPS = 1e-5
_GUARD = 8          # zero guard rows at each end of a slab (>= 1 required)


# ---------------------------------------------------------------------------
# Conv kernel: one (image, row-tile) step of an implicit-GEMM 3x3 conv.
#   slab_ref : (1, 1, S, Cin)    bf16  guarded halo slab of the padded NHWC plane
#   w_ref    : (9*Cin, Cout)     bf16  tap-major conv weight (VMEM resident)
#   [sc/sh]  : (1, Cin)          f32   fused BN1 scale/shift          (conv2 only)
#   [im_ref] : (1, S, 1)         f32   input mask (1 on interior pos) (conv2 only)
#   om_ref   : (M_t, 1)          f32   output mask (0 on padded-column rows)
#   out_ref  : (1, 1, M_t, Cout) bf16  raw conv output (padded-column layout)
#   sum_ref  : (1, 1, 1, Cout)   f32   per-tile per-channel sum
#   sq_ref   : (1, 1, 1, Cout)   f32   per-tile per-channel sum of squares
#   xs_ref   : (S, Cin)          bf16  VMEM scratch holding the (transformed) slab
# ---------------------------------------------------------------------------
def _make_conv_kernel(tap_offsets, m_t, c_in, fuse_pre_bn):
    def compute(xs_ref, w_ref, om_ref, out_ref, sum_ref, sq_ref):
        cout = out_ref.shape[-1]
        acc = jnp.zeros((m_t, cout), jnp.float32)
        for t, off in enumerate(tap_offsets):          # 9 unrolled MXU dots
            acc = acc + jnp.dot(xs_ref[off:off + m_t, :],
                                w_ref[t * c_in:(t + 1) * c_in, :],
                                preferred_element_type=jnp.float32)
        acc = acc * om_ref[...]                        # zero padded-column rows
        out_ref[...] = acc.astype(out_ref.dtype).reshape(out_ref.shape)
        sum_ref[...] = jnp.sum(acc, axis=0, keepdims=True).reshape(sum_ref.shape)
        sq_ref[...] = jnp.sum(acc * acc, axis=0, keepdims=True).reshape(sq_ref.shape)

    if fuse_pre_bn:
        def kernel(slab_ref, w_ref, sc_ref, sh_ref, im_ref, om_ref,
                   out_ref, sum_ref, sq_ref, xs_ref):
            s_rows = xs_ref.shape[0]
            x = slab_ref[...].reshape(s_rows, c_in).astype(jnp.float32)
            y = jnp.maximum(x * sc_ref[...] + sh_ref[...], 0.0)   # BN1 + ReLU
            y = y * im_ref[...].reshape(s_rows, 1)                # keep padding zero
            xs_ref[...] = y.astype(jnp.bfloat16)
            compute(xs_ref, w_ref, om_ref, out_ref, sum_ref, sq_ref)
    else:
        def kernel(slab_ref, w_ref, om_ref, out_ref, sum_ref, sq_ref, xs_ref):
            s_rows = xs_ref.shape[0]
            xs_ref[...] = slab_ref[...].reshape(s_rows, c_in)
            compute(xs_ref, w_ref, om_ref, out_ref, sum_ref, sq_ref)

    return kernel


# ---------------------------------------------------------------------------
# Elementwise kernel: out = relu(raw * scale + shift + residual)   (lane-dense)
# ---------------------------------------------------------------------------
def _bn_add_relu_kernel(x_ref, res_ref, sc_ref, sh_ref, o_ref):
    y = x_ref[...].astype(jnp.float32) * sc_ref[...] + sh_ref[...]
    y = y + res_ref[...].astype(jnp.float32)
    o_ref[...] = jnp.maximum(y, 0.0).astype(o_ref.dtype)


# ---------------------------------------------------------------------------
# Wrapper glue (all plain-JAX ops are cheap layout plumbing around the kernels)
# ---------------------------------------------------------------------------
def _pick_tile_h(h, wp, c, max_bytes=4 << 20, min_rows=64):
    """Output rows per tile: biggest divisor of H whose slab fits VMEM budget,
    preferring >=2 row-tiles per image (megacore) unless tiles become tiny."""
    divs = [d for d in range(1, h + 1) if h % d == 0]
    fits = [d for d in divs if (2 * _GUARD + (d + 2) * wp) * c * 2 <= max_bytes]
    if not fits:
        fits = [1]
    good = [d for d in fits if h // d >= 2 and d * wp >= min_rows]
    return max(good) if good else max(fits)


def _build_slabs(plane, th, g):
    # plane: (N, Hp, Wp, C) zero-padded NHWC -> (N, R, S, C) guarded halo slabs.
    n, hp, wp, c = plane.shape
    r = (hp - 2) // th
    slabs = jnp.stack([plane[:, i * th:i * th + th + 2] for i in range(r)], axis=1)
    slabs = slabs.reshape(n, r, (th + 2) * wp, c)
    return jnp.pad(slabs, ((0, 0), (0, 0), (g, g), (0, 0)))


def _out_mask(th, wp, w):
    col = np.tile(np.arange(wp), th)
    m = ((col >= 1) & (col <= w)).astype(np.float32)
    return jnp.asarray(m.reshape(th * wp, 1))


def _in_mask(r_tiles, th, wp, h, w, g):
    s = 2 * g + (th + 2) * wp
    m = np.zeros((r_tiles, s, 1), np.float32)
    j = np.arange((th + 2) * wp)
    for r in range(r_tiles):
        f = r * th * wp + j
        hh, ww = f // wp, f % wp
        valid = (hh >= 1) & (hh <= h) & (ww >= 1) & (ww <= w)
        m[r, g:g + (th + 2) * wp, 0] = valid.astype(np.float32)
    return jnp.asarray(m)


def _conv3x3(slabs, wk, omask, th, wp, pre=None, imask=None):
    n, r_tiles, s_rows, c_in = slabs.shape
    cout = wk.shape[1]
    m_t = th * wp
    taps = tuple(_GUARD + kh * wp + kw - 1 for kh in range(3) for kw in range(3))
    fuse = pre is not None
    kernel = _make_conv_kernel(taps, m_t, c_in, fuse)

    in_specs = [pl.BlockSpec((1, 1, s_rows, c_in), lambda i, j: (i, j, 0, 0)),
                pl.BlockSpec((9 * c_in, cout), lambda i, j: (0, 0))]
    args = [slabs, wk]
    if fuse:
        in_specs += [pl.BlockSpec((1, c_in), lambda i, j: (0, 0)),
                     pl.BlockSpec((1, c_in), lambda i, j: (0, 0)),
                     pl.BlockSpec((1, s_rows, 1), lambda i, j: (j, 0, 0))]
        args += [pre[0], pre[1], imask]
    in_specs += [pl.BlockSpec((m_t, 1), lambda i, j: (0, 0))]
    args += [omask]

    flops = 2 * n * r_tiles * m_t * 9 * c_in * cout
    bytes_acc = (slabs.size + wk.size + n * r_tiles * m_t * cout) * 2
    raw, sums, sqs = pl.pallas_call(
        kernel,
        grid=(n, r_tiles),
        in_specs=in_specs,
        out_specs=(pl.BlockSpec((1, 1, m_t, cout), lambda i, j: (i, j, 0, 0)),
                   pl.BlockSpec((1, 1, 1, cout), lambda i, j: (i, j, 0, 0)),
                   pl.BlockSpec((1, 1, 1, cout), lambda i, j: (i, j, 0, 0))),
        out_shape=(jax.ShapeDtypeStruct((n, r_tiles, m_t, cout), jnp.bfloat16),
                   jax.ShapeDtypeStruct((n, r_tiles, 1, cout), jnp.float32),
                   jax.ShapeDtypeStruct((n, r_tiles, 1, cout), jnp.float32)),
        scratch_shapes=[pltpu.VMEM((s_rows, c_in), jnp.bfloat16)],
        compiler_params=pltpu.CompilerParams(
            dimension_semantics=("parallel", "parallel")),
        cost_estimate=pl.CostEstimate(flops=flops, transcendentals=0,
                                      bytes_accessed=bytes_acc),
    )(*args)
    return raw, sums, sqs


def _bn_affine(sum_st, sq_st, count, gamma, beta):
    c = gamma.shape[0]
    sum_c = jnp.sum(sum_st, axis=(0, 1, 2))
    sq_c = jnp.sum(sq_st, axis=(0, 1, 2))
    mean = sum_c / count
    var = sq_c / count - mean * mean           # biased batch variance, f32
    scale = gamma.astype(jnp.float32) * jax.lax.rsqrt(var + BN_EPS)
    shift = beta.astype(jnp.float32) - mean * scale
    return scale.reshape(1, c), shift.reshape(1, c)


def _bn_add_relu(raw_ld, res_ld, sc, sh):
    rows, lanes = raw_ld.shape
    # ~2 MiB blocks, multiple of 8 rows, and >=2 grid steps when worthwhile.
    block_rows = max(8, ((2 * 1024 * 1024) // (lanes * 4)) // 8 * 8)
    block_rows = min(block_rows, max(8, ((rows + 7) // 8) * 8))
    if rows >= 16:
        block_rows = min(block_rows, max(8, (rows // 2) // 8 * 8))
    rows_p = ((rows + block_rows - 1) // block_rows) * block_rows
    if rows_p != rows:
        pad = rows_p - rows
        raw_ld = jnp.pad(raw_ld, ((0, pad), (0, 0)))
        res_ld = jnp.pad(res_ld, ((0, pad), (0, 0)))
    out = pl.pallas_call(
        _bn_add_relu_kernel,
        grid=(rows_p // block_rows,),
        in_specs=[pl.BlockSpec((block_rows, lanes), lambda i: (i, 0)),
                  pl.BlockSpec((block_rows, lanes), lambda i: (i, 0)),
                  pl.BlockSpec((1, lanes), lambda i: (0, 0)),
                  pl.BlockSpec((1, lanes), lambda i: (0, 0))],
        out_specs=pl.BlockSpec((block_rows, lanes), lambda i: (i, 0)),
        out_shape=jax.ShapeDtypeStruct((rows_p, lanes), jnp.float32),
        compiler_params=pltpu.CompilerParams(dimension_semantics=("parallel",)),
    )(raw_ld, res_ld, sc, sh)
    return out[:rows]


def block_forward(x_nchw, w1, b1, g1, beta1, w2, b2, g2, beta2):
    # b1/b2 accepted for interface fidelity; conv bias cancels under train-mode BN.
    n, c, h, w = x_nchw.shape
    cout = w1.shape[0]
    assert cout == c, "residual add requires in_channel == out_channel"
    hp, wp = h + 2, w + 2
    th = _pick_tile_h(h, wp, c)
    r_tiles = h // th
    count = float(n * h * w)

    # NCHW -> NHWC, bf16, zero spatial padding (pad 1 each side).
    x_nhwc = jnp.transpose(x_nchw, (0, 2, 3, 1)).astype(jnp.bfloat16)
    xpad = jnp.pad(x_nhwc, ((0, 0), (1, 1), (1, 1), (0, 0)))       # (N,Hp,Wp,C)

    omask = _out_mask(th, wp, w)
    imask = _in_mask(r_tiles, th, wp, h, w, _GUARD)

    wk1 = jnp.transpose(w1, (2, 3, 1, 0)).reshape(9 * c, cout).astype(jnp.bfloat16)
    wk2 = jnp.transpose(w2, (2, 3, 1, 0)).reshape(9 * cout, cout).astype(jnp.bfloat16)

    # ---- conv1 (+ batch stats) ----
    slabs1 = _build_slabs(xpad, th, _GUARD)
    raw1, s1, q1 = _conv3x3(slabs1, wk1, omask, th, wp)
    scale1, shift1 = _bn_affine(s1, q1, count, g1, beta1)

    # ---- conv2 with fused BN1 + ReLU on its input (+ batch stats) ----
    r1_plane = raw1.reshape(n, h, wp, cout)                         # padded-col layout
    r1_pad = jnp.pad(r1_plane, ((0, 0), (1, 1), (0, 0), (0, 0)))    # (N,Hp,Wp,C)
    slabs2 = _build_slabs(r1_pad, th, _GUARD)
    raw2, s2, q2 = _conv3x3(slabs2, wk2, omask, th, wp,
                            pre=(scale1, shift1), imask=imask)
    scale2, shift2 = _bn_affine(s2, q2, count, g2, beta2)

    # ---- BN2 + residual + ReLU, lane-dense (N*H, Wp*C) view ----
    rows = n * h
    raw2_ld = raw2.reshape(rows, wp * cout)
    res_ld = xpad[:, 1:h + 1, :, :].reshape(rows, wp * c)           # bf16 residual
    sc2 = jnp.tile(scale2, (1, wp))
    sh2 = jnp.tile(shift2, (1, wp))
    out_ld = _bn_add_relu(raw2_ld, res_ld, sc2, sh2)                # (rows, Wp*C) f32

    out = out_ld.reshape(n, h, wp, cout)[:, :, 1:w + 1, :]
    return jnp.transpose(out, (0, 3, 1, 2))                         # back to NCHW


# ---------------------------------------------------------------------------
# Pure-JAX f32 reference (PyTorch training-mode forward semantics)
# ---------------------------------------------------------------------------
def reference_forward(x, w1, b1, g1, beta1, w2, b2, g2, beta2):
    def conv_bn(xx, ww, bb, gg, bt, relu):
        y = jax.lax.conv_general_dilated(
            xx, ww, (1, 1), ((1, 1), (1, 1)),
            dimension_numbers=("NCHW", "OIHW", "NCHW"),
        ) + bb[None, :, None, None]
        mean = y.mean(axis=(0, 2, 3), keepdims=True)
        var = ((y - mean) ** 2).mean(axis=(0, 2, 3), keepdims=True)
        y = (y - mean) / jnp.sqrt(var + BN_EPS) * gg[None, :, None, None] \
            + bt[None, :, None, None]
        return jnp.maximum(y, 0.0) if relu else y

    y = conv_bn(x, w1, b1, g1, beta1, True)
    y = conv_bn(y, w2, b2, g2, beta2, False)
    return jnp.maximum(y + x, 0.0)


if __name__ == "__main__":
    key = jax.random.PRNGKey(0)
    ks = jax.random.split(key, 9)
    N, C, H, W = 2, 32, 16, 16

    x = jax.random.normal(ks[0], (N, C, H, W), dtype=jnp.float32)
    w1 = 0.05 * jax.random.normal(ks[1], (C, C, 3, 3), dtype=jnp.float32)
    b1 = 0.10 * jax.random.normal(ks[2], (C,), dtype=jnp.float32)
    g1 = 1.0 + 0.1 * jax.random.normal(ks[3], (C,), dtype=jnp.float32)
    beta1 = 0.1 * jax.random.normal(ks[4], (C,), dtype=jnp.float32)
    w2 = 0.05 * jax.random.normal(ks[5], (C, C, 3, 3), dtype=jnp.float32)
    b2 = 0.10 * jax.random.normal(ks[6], (C,), dtype=jnp.float32)
    g2 = 1.0 + 0.1 * jax.random.normal(ks[7], (C,), dtype=jnp.float32)
    beta2 = 0.1 * jax.random.normal(ks[8], (C,), dtype=jnp.float32)

    out = block_forward(x, w1, b1, g1, beta1, w2, b2, g2, beta2)
    out = jax.block_until_ready(out)
    assert out.shape == (N, C, H, W), out.shape

    ref = jax.block_until_ready(
        reference_forward(x, w1, b1, g1, beta1, w2, b2, g2, beta2))
    # Kernel uses bf16 matmuls / bf16 intermediates / bf16 residual vs f32 reference.
    np.testing.assert_allclose(np.asarray(out), np.asarray(ref), rtol=5e-2, atol=5e-2)

    print("KERNEL_OK")
</pallas_src>

<mosaic_0001>
module attributes {stable_mosaic.version = 11 : i64} {
  func.func @kernel(%arg0: i32, %arg1: i32, %arg2: memref<1x1x196x32xbf16, #tpu.memory_space<vmem>>, %arg3: memref<288x32xbf16, #tpu.memory_space<vmem>>, %arg4: memref<144x1xf32, #tpu.memory_space<vmem>>, %arg5: memref<1x1x144x32xbf16, #tpu.memory_space<vmem>>, %arg6: memref<1x1x1x32xf32, #tpu.memory_space<vmem>>, %arg7: memref<1x1x1x32xf32, #tpu.memory_space<vmem>>, %arg8: memref<196x32xbf16, #tpu.memory_space<vmem>>) attributes {dimension_semantics = [#tpu.dimension_semantics<parallel>, #tpu.dimension_semantics<parallel>], iteration_bounds = array<i64: 2, 2>, scalar_prefetch = 0 : i64, scratch_operands = 1 : i64, tpu.core_type = #tpu.core_type<tc>, window_params = [{transform_indices = @transform_0, window_bounds = array<i64: 1, 1, 196, 32>}, {pipeline_mode = #tpu.pipeline_mode<synchronous>, transform_indices = @transform_1, window_bounds = array<i64: 288, 32>}, {pipeline_mode = #tpu.pipeline_mode<synchronous>, transform_indices = @transform_2, window_bounds = array<i64: 144, 1>}, {transform_indices = @transform_3, window_bounds = array<i64: 1, 1, 144, 32>}, {transform_indices = @transform_4, window_bounds = array<i64: 1, 1, 1, 32>}, {transform_indices = @transform_5, window_bounds = array<i64: 1, 1, 1, 32>}]} {
    %c0 = arith.constant 0 : index
    %c0_0 = arith.constant 0 : index
    %c0_1 = arith.constant 0 : index
    %c0_2 = arith.constant 0 : index
    %0 = vector.load %arg2[%c0, %c0_0, %c0_1, %c0_2] : memref<1x1x196x32xbf16, #tpu.memory_space<vmem>>, vector<1x1x196x32xbf16>
    %1 = vector.shape_cast %0 : vector<1x1x196x32xbf16> to vector<196x32xbf16>
    %c0_3 = arith.constant 0 : index
    %c0_4 = arith.constant 0 : index
    %2 = vector.load %arg8[%c0_3, %c0_4] : memref<196x32xbf16, #tpu.memory_space<vmem>>, vector<196x32xbf16>
    tpu.vector_store %arg8[%c0_3, %c0_4], %1 {strides = array<i32>} : memref<196x32xbf16, #tpu.memory_space<vmem>>, vector<196x32xbf16>,
    %cst = arith.constant 0.000000e+00 : f32
    %3 = vector.broadcast %cst : f32 to vector<144x32xf32>
    %c7 = arith.constant 7 : index
    %c0_5 = arith.constant 0 : index
    %4 = vector.load %arg8[%c7, %c0_5] : memref<196x32xbf16, #tpu.memory_space<vmem>>, vector<144x32xbf16>
    %c0_6 = arith.constant 0 : index
    %c0_7 = arith.constant 0 : index
    %5 = vector.load %arg3[%c0_6, %c0_7] : memref<288x32xbf16, #tpu.memory_space<vmem>>, vector<32x32xbf16>
    %cst_8 = arith.constant dense<0.000000e+00> : vector<144x32xf32>
    %6 = tpu.matmul %4, %5, %cst_8 {dimension_numbers = #tpu.dot_dimension_numbers<[1], [0], [0], [1], [0, 0, 1, 1], [], []>} : vector<144x32xbf16>, vector<32x32xbf16>, vector<144x32xf32> -> vector<144x32xf32>
    %7 = arith.addf %3, %6 : vector<144x32xf32>
    %c8 = arith.constant 8 : index
    %c0_9 = arith.constant 0 : index
    %8 = vector.load %arg8[%c8, %c0_9] : memref<196x32xbf16, #tpu.memory_space<vmem>>, vector<144x32xbf16>
    %c32 = arith.constant 32 : index
    %c0_10 = arith.constant 0 : index
    %9 = vector.load %arg3[%c32, %c0_10] : memref<288x32xbf16, #tpu.memory_space<vmem>>, vector<32x32xbf16>
    %cst_11 = arith.constant dense<0.000000e+00> : vector<144x32xf32>
    %10 = tpu.matmul %8, %9, %cst_11 {dimension_numbers = #tpu.dot_dimension_numbers<[1], [0], [0], [1], [0, 0, 1, 1], [], []>} : vector<144x32xbf16>, vector<32x32xbf16>, vector<144x32xf32> -> vector<144x32xf32>
    %11 = arith.addf %7, %10 : vector<144x32xf32>
    %c9 = arith.constant 9 : index
    %c0_12 = arith.constant 0 : index
    %12 = vector.load %arg8[%c9, %c0_12] : memref<196x32xbf16, #tpu.memory_space<vmem>>, vector<144x32xbf16>
    %c64 = arith.constant 64 : index
    %c0_13 = arith.constant 0 : index
    %13 = vector.load %arg3[%c64, %c0_13] : memref<288x32xbf16, #tpu.memory_space<vmem>>, vector<32x32xbf16>
    %cst_14 = arith.constant dense<0.000000e+00> : vector<144x32xf32>
    %14 = tpu.matmul %12, %13, %cst_14 {dimension_numbers = #tpu.dot_dimension_numbers<[1], [0], [0], [1], [0, 0, 1, 1], [], []>} : vector<144x32xbf16>, vector<32x32xbf16>, vector<144x32xf32> -> vector<144x32xf32>
    %15 = arith.addf %11, %14 : vector<144x32xf32>
    %c25 = arith.constant 25 : index
    %c0_15 = arith.constant 0 : index
    %16 = vector.load %arg8[%c25, %c0_15] : memref<196x32xbf16, #tpu.memory_space<vmem>>, vector<144x32xbf16>
    %c96 = arith.constant 96 : index
    %c0_16 = arith.constant 0 : index
    %17 = vector.load %arg3[%c96, %c0_16] : memref<288x32xbf16, #tpu.memory_space<vmem>>, vector<32x32xbf16>
    %cst_17 = arith.constant dense<0.000000e+00> : vector<144x32xf32>
    %18 = tpu.matmul %16, %17, %cst_17 {dimension_numbers = #tpu.dot_dimension_numbers<[1], [0], [0], [1], [0, 0, 1, 1], [], []>} : vector<144x32xbf16>, vector<32x32xbf16>, vector<144x32xf32> -> vector<144x32xf32>
    %19 = arith.addf %15, %18 : vector<144x32xf32>
    %c26 = arith.constant 26 : index
    %c0_18 = arith.constant 0 : index
    %20 = vector.load %arg8[%c26, %c0_18] : memref<196x32xbf16, #tpu.memory_space<vmem>>, vector<144x32xbf16>
    %c128 = arith.constant 128 : index
    %c0_19 = arith.constant 0 : index
    %21 = vector.load %arg3[%c128, %c0_19] : memref<288x32xbf16, #tpu.memory_space<vmem>>, vector<32x32xbf16>
    %cst_20 = arith.constant dense<0.000000e+00> : vector<144x32xf32>
    %22 = tpu.matmul %20, %21, %cst_20 {dimension_numbers = #tpu.dot_dimension_numbers<[1], [0], [0], [1], [0, 0, 1, 1], [], []>} : vector<144x32xbf16>, vector<32x32xbf16>, vector<144x32xf32> -> vector<144x32xf32>
    %23 = arith.addf %19, %22 : vector<144x32xf32>
    %c27 = arith.constant 27 : index
    %c0_21 = arith.constant 0 : index
    %24 = vector.load %arg8[%c27, %c0_21] : memref<196x32xbf16, #tpu.memory_space<vmem>>, vector<144x32xbf16>
    %c160 = arith.constant 160 : index
    %c0_22 = arith.constant 0 : index
    %25 = vector.load %arg3[%c160, %c0_22] : memref<288x32xbf16, #tpu.memory_space<vmem>>, vector<32x32xbf16>
    %cst_23 = arith.constant dense<0.000000e+00> : vector<144x32xf32>
    %26 = tpu.matmul %24, %25, %cst_23 {dimension_numbers = #tpu.dot_dimension_numbers<[1], [0], [0], [1], [0, 0, 1, 1], [], []>} : vector<144x32xbf16>, vector<32x32xbf16>, vector<144x32xf32> -> vector<144x32xf32>
    %27 = arith.addf %23, %26 : vector<144x32xf32>
    %c43 = arith.constant 43 : index
    %c0_24 = arith.constant 0 : index
    %28 = vector.load %arg8[%c43, %c0_24] : memref<196x32xbf16, #tpu.memory_space<vmem>>, vector<144x32xbf16>
    %c192 = arith.constant 192 : index
    %c0_25 = arith.constant 0 : index
    %29 = vector.load %arg3[%c192, %c0_25] : memref<288x32xbf16, #tpu.memory_space<vmem>>, vector<32x32xbf16>
    %cst_26 = arith.constant dense<0.000000e+00> : vector<144x32xf32>
    %30 = tpu.matmul %28, %29, %cst_26 {dimension_numbers = #tpu.dot_dimension_numbers<[1], [0], [0], [1], [0, 0, 1, 1], [], []>} : vector<144x32xbf16>, vector<32x32xbf16>, vector<144x32xf32> -> vector<144x32xf32>
    %31 = arith.addf %27, %30 : vector<144x32xf32>
    %c44 = arith.constant 44 : index
    %c0_27 = arith.constant 0 : index
    %32 = vector.load %arg8[%c44, %c0_27] : memref<196x32xbf16, #tpu.memory_space<vmem>>, vector<144x32xbf16>
    %c224 = arith.constant 224 : index
    %c0_28 = arith.constant 0 : index
    %33 = vector.load %arg3[%c224, %c0_28] : memref<288x32xbf16, #tpu.memory_space<vmem>>, vector<32x32xbf16>
    %cst_29 = arith.constant dense<0.000000e+00> : vector<144x32xf32>
    %34 = tpu.matmul %32, %33, %cst_29 {dimension_numbers = #tpu.dot_dimension_numbers<[1], [0], [0], [1], [0, 0, 1, 1], [], []>} : vector<144x32xbf16>, vector<32x32xbf16>, vector<144x32xf32> -> vector<144x32xf32>
    %35 = arith.addf %31, %34 : vector<144x32xf32>
    %c45 = arith.constant 45 : index
    %c0_30 = arith.constant 0 : index
    %36 = vector.load %arg8[%c45, %c0_30] : memref<196x32xbf16, #tpu.memory_space<vmem>>, vector<144x32xbf16>
    %c256 = arith.constant 256 : index
    %c0_31 = arith.constant 0 : index
    %37 = vector.load %arg3[%c256, %c0_31] : memref<288x32xbf16, #tpu.memory_space<vmem>>, vector<32x32xbf16>
    %cst_32 = arith.constant dense<0.000000e+00> : vector<144x32xf32>
    %38 = tpu.matmul %36, %37, %cst_32 {dimension_numbers = #tpu.dot_dimension_numbers<[1], [0], [0], [1], [0, 0, 1, 1], [], []>} : vector<144x32xbf16>, vector<32x32xbf16>, vector<144x32xf32> -> vector<144x32xf32>
    %39 = arith.addf %35, %38 : vector<144x32xf32>
    %c0_33 = arith.constant 0 : index
    %c0_34 = arith.constant 0 : index
    %40 = vector.load %arg4[%c0_33, %c0_34] : memref<144x1xf32, #tpu.memory_space<vmem>>, vector<144x1xf32>
    %41 = vector.broadcast %40 : vector<144x1xf32> to vector<144x32xf32>
    %42 = arith.mulf %39, %41 : vector<144x32xf32>
    %43 = arith.truncf %42 : vector<144x32xf32> to vector<144x32xbf16>
    %44 = vector.shape_cast %43 : vector<144x32xbf16> to vector<1x1x144x32xbf16>
    %c0_35 = arith.constant 0 : index
    %c0_36 = arith.constant 0 : index
    %c0_37 = arith.constant 0 : index
    %c0_38 = arith.constant 0 : index
    %45 = vector.load %arg5[%c0_35, %c0_36, %c0_37, %c0_38] : memref<1x1x144x32xbf16, #tpu.memory_space<vmem>>, vector<1x1x144x32xbf16>
    tpu.vector_store %arg5[%c0_35, %c0_36, %c0_37, %c0_38], %44 {strides = array<i32>} : memref<1x1x144x32xbf16, #tpu.memory_space<vmem>>, vector<1x1x144x32xbf16>,
    %cst_39 = arith.constant dense<0.000000e+00> : vector<32xf32>
    %46 = vector.multi_reduction <add>, %42, %cst_39 [0] : vector<144x32xf32> to vector<32xf32>
    %47 = vector.shape_cast %46 : vector<32xf32> to vector<1x32xf32>
    %48 = vector.shape_cast %47 : vector<1x32xf32> to vector<1x1x1x32xf32>
    %c0_40 = arith.constant 0 : index
    %c0_41 = arith.constant 0 : index
    %c0_42 = arith.constant 0 : index
    %c0_43 = arith.constant 0 : index
    %49 = vector.load %arg6[%c0_40, %c0_41, %c0_42, %c0_43] : memref<1x1x1x32xf32, #tpu.memory_space<vmem>>, vector<1x1x1x32xf32>
    tpu.vector_store %arg6[%c0_40, %c0_41, %c0_42, %c0_43], %48 {strides = array<i32>} : memref<1x1x1x32xf32, #tpu.memory_space<vmem>>, vector<1x1x1x32xf32>,
    %50 = arith.mulf %42, %42 : vector<144x32xf32>
    %cst_44 = arith.constant dense<0.000000e+00> : vector<32xf32>
    %51 = vector.multi_reduction <add>, %50, %cst_44 [0] : vector<144x32xf32> to vector<32xf32>
    %52 = vector.shape_cast %51 : vector<32xf32> to vector<1x32xf32>
    %53 = vector.shape_cast %52 : vector<1x32xf32> to vector<1x1x1x32xf32>
    %c0_45 = arith.constant 0 : index
    %c0_46 = arith.constant 0 : index
    %c0_47 = arith.constant 0 : index
    %c0_48 = arith.constant 0 : index
    %54 = vector.load %arg7[%c0_45, %c0_46, %c0_47, %c0_48] : memref<1x1x1x32xf32, #tpu.memory_space<vmem>>, vector<1x1x1x32xf32>
    tpu.vector_store %arg7[%c0_45, %c0_46, %c0_47, %c0_48], %53 {strides = array<i32>} : memref<1x1x1x32xf32, #tpu.memory_space<vmem>>, vector<1x1x1x32xf32>,
    return
  }
  func.func @transform_0(%arg0: i32, %arg1: i32) -> (i32, i32, i32, i32) {
    %c0_i32 = arith.constant 0 : i32
    %c0_i32_0 = arith.constant 0 : i32
    %c0_i32_1 = arith.constant 0 : i32
    return %arg0, %arg1, %c0_i32, %c0_i32_0 : i32, i32, i32, i32
  }
  func.func @transform_1(%arg0: i32, %arg1: i32) -> (i32, i32) {
    %c0_i32 = arith.constant 0 : i32
    %c0_i32_0 = arith.constant 0 : i32
    %c0_i32_1 = arith.constant 0 : i32
    return %c0_i32, %c0_i32_0 : i32, i32
  }
  func.func @transform_2(%arg0: i32, %arg1: i32) -> (i32, i32) {
    %c0_i32 = arith.constant 0 : i32
    %c0_i32_0 = arith.constant 0 : i32
    %c0_i32_1 = arith.constant 0 : i32
    return %c0_i32, %c0_i32_0 : i32, i32
  }
  func.func @transform_3(%arg0: i32, %arg1: i32) -> (i32, i32, i32, i32) {
    %c0_i32 = arith.constant 0 : i32
    %c0_i32_0 = arith.constant 0 : i32
    %c0_i32_1 = arith.constant 0 : i32
    return %arg0, %arg1, %c0_i32, %c0_i32_0 : i32, i32, i32, i32
  }
  func.func @transform_4(%arg0: i32, %arg1: i32) -> (i32, i32, i32, i32) {
    %c0_i32 = arith.constant 0 : i32
    %c0_i32_0 = arith.constant 0 : i32
    %c0_i32_1 = arith.constant 0 : i32
    return %arg0, %arg1, %c0_i32, %c0_i32_0 : i32, i32, i32, i32
  }
  func.func @transform_5(%arg0: i32, %arg1: i32) -> (i32, i32, i32, i32) {
    %c0_i32 = arith.constant 0 : i32
    %c0_i32_0 = arith.constant 0 : i32
    %c0_i32_1 = arith.constant 0 : i32
    return %arg0, %arg1, %c0_i32, %c0_i32_0 : i32, i32, i32, i32
  }
}

</mosaic_0001>

<llo_original>
// kernel: tpu_custom_call.1
$region0: #{tpu_custom_call.1}
  #allocation0 [shape = 'u32[]', space=smem, size = 0x4, offset = 0x4, fixed_abs, tag = 'smem constant byte address 0x4 - core index']
  #allocation1 [shape = 'u32[72,128]{1,0:T(1,128)}', space=vmem, size = 0x9000, scoped, tag = 'internal scratch']
  #allocation2 [shape = 'bf16[196,32]{1,0:T(8,128)(2,1)}', space=vmem, size = 0xc800, scoped, tag = 'scratch operand']
  %s0 = inlined_call_operand.vmem [shape: bf16[2,2,196,32], index: 0, kind: input, shape index: {}]
  %s1 = inlined_call_operand.vmem [shape: bf16[288,32], index: 1, kind: input, shape index: {}]
  %s2 = inlined_call_operand.vmem [shape: f32[144,1], index: 2, kind: input, shape index: {}]
  %s3 = inlined_call_operand.vmem [shape: bf16[2,2,144,32], index: 3, kind: output, shape index: {0}]
  %s4 = inlined_call_operand.hbm [shape: f32[2,2,1,32], index: 4, kind: output, shape index: {1}]
  %s5 = inlined_call_operand.hbm [shape: f32[2,2,1,32], index: 5, kind: output, shape index: {2}]
  %6 = xla_tuple %s3, %s4, %s5
  %s7 = sld [smem:[#allocation0]]
  $region61: #{tpu_custom_call.1} parent=0
    _
  %s9 = ssub.s32 1, %s7
  %s10 = scalar_select 0, %s9, %s7
  $region1: #{tpu_custom_call.1} parent=0
    #allocation3 [shape = 'u8[1024]{0}', space=vmem, size = 0x400, scoped, tag = 'output window, operand 1']
    #allocation4 [shape = 's32[2]{0}', space=sflag, size = 0x8, scoped, tag = 'scoped memory for tpu_custom_call.1']
    #allocation5 [shape = 'u8[1024]{0}', space=vmem, size = 0x400, scoped, tag = 'output window, operand 2']
    #allocation6 [shape = 's32[2]{0}', space=sflag, size = 0x8, scoped, tag = 'scoped memory for tpu_custom_call.1']
    %11 = vsyncpa [#allocation4], 0
    %s12 = scalar_lea.sflag [#allocation4], 1
    %13 = vsyncpa %s12, 0
    %14 = vsyncpa [#allocation6], 0
    %s15 = scalar_lea.sflag [#allocation6], 1
    %16 = vsyncpa %s15, 0
    loop: start=0, step=1, limit=6
    $region2: #{tpu_custom_call.1} parent=1 // loop_pre_header
      _
    $region3: #{tpu_custom_call.1} parent=1 // loop_header
      %s18 = sphi 0, %s22
      %p19 = scmp.ge.s32.totalorder %s18, 6
      %s25 = sphi 0, %s37
      %s26 = sphi 0, %s33
      %s27 = sphi 0, %s25
      %s28 = sphi 0, %s26
      %s29 = sphi 0, %s27
      %s30 = sphi 0, %s28
      %s42 = sphi 0, %s44
      %s45 = sphi 0, %s42
      %s46 = sphi 0, %s45
      %s62 = sphi 0, %s46
      %s66 = sphi 0, %s66
      %s68 = sphi 0, %s66
      %s69 = sphi 0, %s68
      %s83 = sphi 0, %s69
      %s87 = sphi 0, %s87
      %s89 = sphi 0, %s87
      %s90 = sphi 0, %s89
      %s104 = sphi 0, %s90
      %s112 = sphi 0, %s114
      %s115 = sphi 0, %s112
      %s116 = sphi 0, %s115
      %s132 = sphi 0, %s116
      %s140 = sphi 0, %s142
      %s143 = sphi 0, %s140
      %s144 = sphi 0, %s143
      %s160 = sphi 0, %s144
      %s168 = sphi 0, %s170
      %s171 = sphi 0, %s168
      %s172 = sphi 0, %s171
      %s188 = sphi 0, %s172
    $region4: #{tpu_custom_call.1} parent=1 // loop_header_branch
      %21 = sbr.rel (%p19) target = $region8
    $region5: #{tpu_custom_call.1} parent=1 // loop_body
      %s23 = ssub.s32 %s18, 1
      %s24 = ssub.s32 %s18, 2
      %s31 = sadd.s32 1, %s26
      %p32 = scmp.ge.s32.totalorder %s31, 2
      %s33 = scalar_select %p32, 0, %s31
      %s34 = sadd.s32 1, %s25
      %s35 = scalar_select %p32, %s34, %s25
      %p36 = scmp.ge.s32.totalorder %s35, 2
      %s37 = scalar_select %p36, 0, %s35
      %s38 = ssub.s32 %s25, %s37
      %s39 = ssub.s32 %s26, %s33
      %s40 = sor.u32 %s38, %s39
      %p41 = scmp.eq.s32.totalorder %s40, 0
      %s43 = sadd.s32 %s42, 1
      %s44 = scalar_select %p41, %s42, %s43
      %p47 = pneg %p41
      %p48 = scmp.eq.s32.totalorder %s18, 3
      %p49 = por %p47, %p48
      %p50 = scmp.ne.s32.totalorder %s42, %s45
      %p51 = scmp.eq.s32.totalorder %s18, 0
      %p52 = por %p50, %p51
      %p53 = scmp.ne.s32.totalorder %s42, %s45
      %p54 = scmp.eq.s32.totalorder %s23, 3
      %p55 = por %p53, %p54
      %p56 = scmp.ne.s32.totalorder %s45, %s46
      %p57 = scmp.eq.s32.totalorder %s23, 0
      %p58 = por %p56, %p57
      %p59 = scmp.ne.s32.totalorder %s45, %s46
      %p60 = scmp.eq.s32.totalorder %s24, 3
      %p61 = por %p59, %p60
      %p63 = scmp.ne.s32.totalorder %s46, %s62
      %p64 = scmp.eq.s32.totalorder %s24, 0
      %p65 = por %p63, %p64
      %s67 = sadd.s32 %s66, 1
      %p70 = scmp.eq.s32.totalorder %s18, 3
      %p71 = scmp.ne.s32.totalorder %s66, %s68
      %p72 = scmp.eq.s32.totalorder %s18, 0
      %p73 = por %p71, %p72
      %p74 = scmp.ne.s32.totalorder %s66, %s68
      %p75 = scmp.eq.s32.totalorder %s23, 3
      %p76 = por %p74, %p75
      %p77 = scmp.ne.s32.totalorder %s68, %s69
      %p78 = scmp.eq.s32.totalorder %s23, 0
      %p79 = por %p77, %p78
      %p80 = scmp.ne.s32.totalorder %s68, %s69
      %p81 = scmp.eq.s32.totalorder %s24, 3
      %p82 = por %p80, %p81
      %p84 = scmp.ne.s32.totalorder %s69, %s83
      %p85 = scmp.eq.s32.totalorder %s24, 0
      %p86 = por %p84, %p85
      %s88 = sadd.s32 %s87, 1
      %p91 = scmp.eq.s32.totalorder %s18, 3
      %p92 = scmp.ne.s32.totalorder %s87, %s89
      %p93 = scmp.eq.s32.totalorder %s18, 0
      %p94 = por %p92, %p93
      %p95 = scmp.ne.s32.totalorder %s87, %s89
      %p96 = scmp.eq.s32.totalorder %s23, 3
      %p97 = por %p95, %p96
      %p98 = scmp.ne.s32.totalorder %s89, %s90
      %p99 = scmp.eq.s32.totalorder %s23, 0
      %p100 = por %p98, %p99
      %p101 = scmp.ne.s32.totalorder %s89, %s90
      %p102 = scmp.eq.s32.totalorder %s24, 3
      %p103 = por %p101, %p102
      %p105 = scmp.ne.s32.totalorder %s90, %s104
      %p106 = scmp.eq.s32.totalorder %s24, 0
      %p107 = por %p105, %p106
      %s108 = ssub.s32 %s25, %s37
      %s109 = ssub.s32 %s26, %s33
      %s110 = sor.u32 %s108, %s109
      %p111 = scmp.eq.s32.totalorder %s110, 0
      %s113 = sadd.s32 %s112, 1
      %s114 = scalar_select %p111, %s112, %s113
      %p117 = pneg %p111
      %p118 = scmp.eq.s32.totalorder %s18, 3
      %p119 = por %p117, %p118
      %p120 = scmp.ne.s32.totalorder %s112, %s115
      %p121 = scmp.eq.s32.totalorder %s18, 0
      %p122 = por %p120, %p121
      %p123 = scmp.ne.s32.totalorder %s112, %s115
      %p124 = scmp.eq.s32.totalorder %s23, 3
      %p125 = por %p123, %p124
      %p126 = scmp.ne.s32.totalorder %s115, %s116
      %p127 = scmp.eq.s32.totalorder %s23, 0
      %p128 = por %p126, %p127
      %p129 = scmp.ne.s32.totalorder %s115, %s116
      %p130 = scmp.eq.s32.totalorder %s24, 3
      %p131 = por %p129, %p130
      %p133 = scmp.ne.s32.totalorder %s116, %s132
      %p134 = scmp.eq.s32.totalorder %s24, 0
      %p135 = por %p133, %p134
      %s136 = ssub.s32 %s25, %s37
      %s137 = ssub.s32 %s26, %s33
      %s138 = sor.u32 %s136, %s137
      %p139 = scmp.eq.s32.totalorder %s138, 0
      %s141 = sadd.s32 %s140, 1
      %s142 = scalar_select %p139, %s140, %s141
      %p145 = pneg %p139
      %p146 = scmp.eq.s32.totalorder %s18, 3
      %p147 = por %p145, %p146
      %p148 = scmp.ne.s32.totalorder %s140, %s143
      %p149 = scmp.eq.s32.totalorder %s18, 0
      %p150 = por %p148, %p149
      %p151 = scmp.ne.s32.totalorder %s140, %s143
      %p152 = scmp.eq.s32.totalorder %s23, 3
      %p153 = por %p151, %p152
      %p154 = scmp.ne.s32.totalorder %s143, %s144
      %p155 = scmp.eq.s32.totalorder %s23, 0
      %p156 = por %p154, %p155
      %p157 = scmp.ne.s32.totalorder %s143, %s144
      %p158 = scmp.eq.s32.totalorder %s24, 3
      %p159 = por %p157, %p158
      %p161 = scmp.ne.s32.totalorder %s144, %s160
      %p162 = scmp.eq.s32.totalorder %s24, 0
      %p163 = por %p161, %p162
      %s164 = ssub.s32 %s25, %s37
      %s165 = ssub.s32 %s26, %s33
      %s166 = sor.u32 %s164, %s165
      %p167 = scmp.eq.s32.totalorder %s166, 0
      %s169 = sadd.s32 %s168, 1
      %s170 = scalar_select %p167, %s168, %s169
      %p173 = pneg %p167
      %p174 = scmp.eq.s32.totalorder %s18, 3
      %p175 = por %p173, %p174
      %p176 = scmp.ne.s32.totalorder %s168, %s171
      %p177 = scmp.eq.s32.totalorder %s18, 0
      %p178 = por %p176, %p177
      %p179 = scmp.ne.s32.totalorder %s168, %s171
      %p180 = scmp.eq.s32.totalorder %s23, 3
      %p181 = por %p179, %p180
      %p182 = scmp.ne.s32.totalorder %s171, %s172
      %p183 = scmp.eq.s32.totalorder %s23, 0
      %p184 = por %p182, %p183
      %p185 = scmp.ne.s32.totalorder %s171, %s172
      %p186 = scmp.eq.s32.totalorder %s24, 3
      %p187 = por %p185, %p186
      %p189 = scmp.ne.s32.totalorder %s172, %s188
      %p190 = scmp.eq.s32.totalorder %s24, 0
      %p191 = por %p189, %p190
      %p192 = scmp.le.s32.totalorder 1, %s18
      %p193 = scmp.lt.s32.totalorder %s18, 5
      %p194 = pnand %p192, %p193
      %p195 = pneg %p194
      // Predicated region
      $region9: #{tpu_custom_call.1} parent=5 // pred_check
        _
      $region10: #{tpu_custom_call.1} parent=5 // pred_check_branch
        %197 = sbr.rel (%p194) target = $region12
      $region11: #{tpu_custom_call.1} parent=5 // pred_region
        %s198 = ssub.s32 %s18, 1
        // Predicated region
        $region13: #{tpu_custom_call.1} parent=11 // pred_check
          %p199 = pneg %p79
        $region14: #{tpu_custom_call.1} parent=11 // pred_check_branch
          %201 = sbr.rel (%p199) target = $region16
        $region15: #{tpu_custom_call.1} parent=11 // pred_region
          _
        $region16: #{tpu_custom_call.1} parent=11 // pred_fallthru
          _
        // Predicated region
        $region17: #{tpu_custom_call.1} parent=11 // pred_check
          %p202 = pneg %p100
        $region18: #{tpu_custom_call.1} parent=11 // pred_check_branch
          %204 = sbr.rel (%p202) target = $region20
        $region19: #{tpu_custom_call.1} parent=11 // pred_region
          _
        $region20: #{tpu_custom_call.1} parent=11 // pred_fallthru
          _
      $region12: #{tpu_custom_call.1} parent=5 // pred_fallthru
        _
      %p205 = scmp.lt.s32.totalorder %s18, 4
      // Predicated region
      $region21: #{tpu_custom_call.1} parent=5 // pred_check
        %p206 = pneg %p205
      $region22: #{tpu_custom_call.1} parent=5 // pred_check_branch
        %208 = sbr.rel (%p206) target = $region24
      $region23: #{tpu_custom_call.1} parent=5 // pred_region
        // Predicated region
        $region25: #{tpu_custom_call.1} parent=23 // pred_check
          %p209 = pneg %p52
        $region26: #{tpu_custom_call.1} parent=23 // pred_check_branch
          %211 = sbr.rel (%p209) target = $region28
        $region27: #{tpu_custom_call.1} parent=23 // pred_region
          %p212 = scmp.lt.s32.totalorder %s25, 1
          %s213 = scalar_select %p212, %s25, 1
          %p214 = scmp.lt.s32.totalorder %s26, 1
          %s215 = scalar_select %p214, %s26, 1
          %s216 = smul.addr %s215, 25
          %s217 = smul.addr %s213, 50
          %s218 = sadd.s32 %s216, %s217
          %s219 = smul.addr %s218, 4
          %s220 = scalar_lea.vmem %s0, %s219
        $region28: #{tpu_custom_call.1} parent=23 // pred_fallthru
          _
      $region24: #{tpu_custom_call.1} parent=5 // pred_fallthru
        _
      %p221 = scmp.le.s32.totalorder 1, %s18
      %p222 = scmp.lt.s32.totalorder %s18, 5
      %p223 = pnand %p221, %p222
      %p224 = pneg %p223
      // Predicated region
      $region29: #{tpu_custom_call.1} parent=5 // pred_check
        _
      $region30: #{tpu_custom_call.1} parent=5 // pred_check_branch
        %226 = sbr.rel (%p223) target = $region32
      $region31: #{tpu_custom_call.1} parent=5 // pred_region
        %s227 = ssub.s32 %s18, 1
        %p228 = scmp.lt.s32.totalorder %s27, 1
        %s229 = scalar_select %p228, %s27, 1
        %p230 = scmp.lt.s32.totalorder %s28, 1
        %s231 = scalar_select %p230, %s28, 1
        %s232 = smul.addr %s231, 25
        %s233 = smul.addr %s229, 50
        %s234 = sadd.s32 %s232, %s233
        %s235 = smul.addr %s234, 4
        %s236 = scalar_lea.vmem %s0, %s235
        %p237 = pneg %p58
        %p238 = pneg %p55
        %p239 = pneg %p79
        %p240 = pneg %p76
        %p241 = pneg %p100
        %p242 = pneg %p97
        %p243 = pneg %p128
        %p244 = pneg %p125
        %p245 = scmp.lt.s32.totalorder %s27, 1
        %s246 = scalar_select %p245, %s27, 1
        %p247 = scmp.lt.s32.totalorder %s28, 1
        %s248 = scalar_select %p247, %s28, 1
        %s249 = smul.addr %s248, 18
        %s250 = smul.addr %s246, 36
        %s251 = sadd.s32 %s249, %s250
        %s252 = smul.addr %s251, 4
        %s253 = scalar_lea.vmem %s3, %s252
        %p254 = pneg %p156
        %p255 = pneg %p153
        %s256 = sand.u32 %s143, 1
        %s257 = scalar_lea.sflag [#allocation4], %s256
        %s258 = sand.u32 %s143, 1
        %s259 = scalar_lea.vmem [#allocation3], %s258
        %p260 = pneg %p184
        %p261 = pneg %p181
        %s262 = sand.u32 %s171, 1
        %s263 = scalar_lea.sflag [#allocation6], %s262
        %s264 = sand.u32 %s171, 1
        %s265 = scalar_lea.vmem [#allocation5], %s264
        %p266 = scmp.lt.s32.totalorder %s27, 1
        %s267 = scalar_select %p266, %s27, 1
        %p268 = scmp.lt.s32.totalorder %s28, 1
        %s269 = scalar_select %p268, %s28, 1
        %s270 = smul.addr %s269, 25
        %s271 = smul.addr %s267, 50
        %s272 = sadd.s32 %s270, %s271
        %s273 = smul.addr %s272, 4
        %s274 = scalar_lea.vmem %s0, %s273
        %p275 = scmp.lt.s32.totalorder %s27, 1
        %s276 = scalar_select %p275, %s27, 1
        %p277 = scmp.lt.s32.totalorder %s28, 1
        %s278 = scalar_select %p277, %s28, 1
        %s279 = smul.addr %s278, 18
        %s280 = smul.addr %s276, 36
        %s281 = sadd.s32 %s279, %s280
        %s282 = smul.addr %s281, 4
        %s283 = scalar_lea.vmem %s3, %s282
        %v285 = vld [vmem:[%s274] sm:$0xf]
        %v286 = vld [vmem:[%s274 + $0x4] sm:$0xf]
        %v287 = vld [vmem:[%s274 + $0x8] sm:$0xf]
        %v288 = vld [vmem:[%s274 + $0xc] sm:$0xf]
        %v289 = vld [vmem:[%s274 + $0x10] sm:$0xf]
        %v290 = vld [vmem:[%s274 + $0x14] sm:$0xf]
        %v291 = vld [vmem:[%s274 + $0x18] sm:$0xf]
        %v292 = vld [vmem:[%s274 + $0x1c] sm:$0xf]
        %v293 = vld [vmem:[%s274 + $0x20] sm:$0xf]
        %v294 = vld [vmem:[%s274 + $0x24] sm:$0xf]
        %v295 = vld [vmem:[%s274 + $0x28] sm:$0xf]
        %v296 = vld [vmem:[%s274 + $0x2c] sm:$0xf]
        %v297 = vld [vmem:[%s274 + $0x30] sm:$0xf]
        %v298 = vld [vmem:[%s274 + $0x34] sm:$0xf]
        %v299 = vld [vmem:[%s274 + $0x38] sm:$0xf]
        %v300 = vld [vmem:[%s274 + $0x3c] sm:$0xf]
        %v301 = vld [vmem:[%s274 + $0x40] sm:$0xf]
        %v302 = vld [vmem:[%s274 + $0x44] sm:$0xf]
        %v303 = vld [vmem:[%s274 + $0x48] sm:$0xf]
        %v304 = vld [vmem:[%s274 + $0x4c] sm:$0xf]
        %v305 = vld [vmem:[%s274 + $0x50] sm:$0xf]
        %v306 = vld [vmem:[%s274 + $0x54] sm:$0xf]
        %v307 = vld [vmem:[%s274 + $0x58] sm:$0xf]
        %v308 = vld [vmem:[%s274 + $0x5c] sm:$0xf]
        %v309 = vld [vmem:[%s274 + $0x60] sm:$0x3]
        %vm310 = vcmask 257024
        %311 = vst.msk [vmem:[#allocation2] sm:$0xf] %vm310, %v285
        %312 = vst.msk [vmem:[#allocation2 + $0x4] sm:$0xf] %vm310, %v286
        %313 = vst.msk [vmem:[#allocation2 + $0x8] sm:$0xf] %vm310, %v287
        %314 = vst.msk [vmem:[#allocation2 + $0xc] sm:$0xf] %vm310, %v288
        %315 = vst.msk [vmem:[#allocation2 + $0x10] sm:$0xf] %vm310, %v289
        %316 = vst.msk [vmem:[#allocation2 + $0x14] sm:$0xf] %vm310, %v290
        %317 = vst.msk [vmem:[#allocation2 + $0x18] sm:$0xf] %vm310, %v291
        %318 = vst.msk [vmem:[#allocation2 + $0x1c] sm:$0xf] %vm310, %v292
        %319 = vst.msk [vmem:[#allocation2 + $0x20] sm:$0xf] %vm310, %v293
        %320 = vst.msk [vmem:[#allocation2 + $0x24] sm:$0xf] %vm310, %v294
        %321 = vst.msk [vmem:[#allocation2 + $0x28] sm:$0xf] %vm310, %v295
        %322 = vst.msk [vmem:[#allocation2 + $0x2c] sm:$0xf] %vm310, %v296
        %323 = vst.msk [vmem:[#allocation2 + $0x30] sm:$0xf] %vm310, %v297
        %324 = vst.msk [vmem:[#allocation2 + $0x34] sm:$0xf] %vm310, %v298
        %325 = vst.msk [vmem:[#allocation2 + $0x38] sm:$0xf] %vm310, %v299
        %326 = vst.msk [vmem:[#allocation2 + $0x3c] sm:$0xf] %vm310, %v300
        %327 = vst.msk [vmem:[#allocation2 + $0x40] sm:$0xf] %vm310, %v301
        %328 = vst.msk [vmem:[#allocation2 + $0x44] sm:$0xf] %vm310, %v302
        %329 = vst.msk [vmem:[#allocation2 + $0x48] sm:$0xf] %vm310, %v303
        %330 = vst.msk [vmem:[#allocation2 + $0x4c] sm:$0xf] %vm310, %v304
        %331 = vst.msk [vmem:[#allocation2 + $0x50] sm:$0xf] %vm310, %v305
        %332 = vst.msk [vmem:[#allocation2 + $0x54] sm:$0xf] %vm310, %v306
        %333 = vst.msk [vmem:[#allocation2 + $0x58] sm:$0xf] %vm310, %v307
        %334 = vst.msk [vmem:[#allocation2 + $0x5c] sm:$0xf] %vm310, %v308
        %vm335 = vcmask 254976
        %336 = vst.msk [vmem:[#allocation2 + $0x60] sm:$0x3] %vm335, %v309
        %v337 = vld [vmem:[#allocation2] sm:$0x8]
        %v338 = vld [vmem:[#allocation2 + $0x4] sm:$0xf]
        %v339 = vld [vmem:[#allocation2 + $0x8] sm:$0xf]
        %v340 = vld [vmem:[#allocation2 + $0xc] sm:$0xf]
        %v341 = vld [vmem:[#allocation2 + $0x10] sm:$0xf]
        %v342 = vld [vmem:[#allocation2 + $0x14] sm:$0xf]
        %v343 = vld [vmem:[#allocation2 + $0x18] sm:$0xf]
        %v344 = vld [vmem:[#allocation2 + $0x1c] sm:$0xf]
        %v345 = vld [vmem:[#allocation2 + $0x20] sm:$0xf]
        %v346 = vld [vmem:[#allocation2 + $0x24] sm:$0xf]
        %v347 = vld [vmem:[#allocation2 + $0x28] sm:$0xf]
        %v348 = vld [vmem:[#allocation2 + $0x2c] sm:$0xf]
        %v349 = vld [vmem:[#allocation2 + $0x30] sm:$0xf]
        %v350 = vld [vmem:[#allocation2 + $0x34] sm:$0xf]
        %v351 = vld [vmem:[#allocation2 + $0x38] sm:$0xf]
        %v352 = vld [vmem:[#allocation2 + $0x3c] sm:$0xf]
        %v353 = vld [vmem:[#allocation2 + $0x40] sm:$0xf]
        %v354 = vld [vmem:[#allocation2 + $0x44] sm:$0xf]
        %v355 = vld [vmem:[#allocation2 + $0x48] sm:$0xf]
        %v356 = vld [vmem:[%s1] sm:$0xf]
        %v357 = vld [vmem:[%s1 + $0x4] sm:$0xf]
        %v358 = vld [vmem:[%s1 + $0x8] sm:$0xf]
        %v359 = vld [vmem:[%s1 + $0xc] sm:$0xf]
        %v360 = vld [vmem:[%s1 + $0x10] sm:$0xf]
        %v361 = vld [vmem:[%s1 + $0x14] sm:$0xf]
        %v362 = vld [vmem:[%s1 + $0x18] sm:$0xf]
        %v363 = vld [vmem:[%s1 + $0x1c] sm:$0xf]
        %v382 = vunpack.c.l.b16 %v338
        %v383 = vunpack.c.l.b16 %v339
        %v384 = vunpack.c.l.b16 %v340
        %v385 = vunpack.c.l.b16 %v341
        %v386 = vunpack.c.l.b16 %v342
        %v387 = vunpack.c.l.b16 %v343
        %v388 = vunpack.c.l.b16 %v344
        %v389 = vunpack.c.l.b16 %v345
        %v390 = vunpack.c.l.b16 %v346
        %v391 = vunpack.c.l.b16 %v347
        %v392 = vunpack.c.l.b16 %v348
        %v393 = vunpack.c.l.b16 %v349
        %v394 = vunpack.c.l.b16 %v350
        %v395 = vunpack.c.l.b16 %v351
        %v396 = vunpack.c.l.b16 %v352
        %v397 = vunpack.c.l.b16 %v353
        %v398 = vunpack.c.l.b16 %v354
        %v399 = vunpack.c.l.b16 %v355
        %v400 = vpack.c.b16 %v383, %v382
        %v401 = vpack.c.b16 %v385, %v384
        %v402 = vpack.c.b16 %v387, %v386
        %v403 = vpack.c.b16 %v389, %v388
        %v404 = vpack.c.b16 %v391, %v390
        %v405 = vpack.c.b16 %v393, %v392
        %v406 = vpack.c.b16 %v395, %v394
        %v407 = vpack.c.b16 %v397, %v396
        %v408 = vpack.c.b16 %v399, %v398
        %v413 = vunpack.c.l.b16 %v360
        %v414 = vunpack.c.l.b16 %v361
        %v415 = vunpack.c.l.b16 %v362
        %v416 = vunpack.c.l.b16 %v363
        %v417 = vpack.c.b16 %v414, %v413
        %v418 = vpack.c.b16 %v416, %v415
        %vm421 = vcmask 261120
        %v423 = vsel %vm421, %v400, 0
        %v426 = vsel %vm421, %v401, 0
        %v429 = vsel %vm421, %v402, 0
        %v432 = vsel %vm421, %v403, 0
        %v435 = vsel %vm421, %v404, 0
        %v438 = vsel %vm421, %v405, 0
        %v441 = vsel %vm421, %v406, 0
        %v444 = vsel %vm421, %v407, 0
        %v447 = vsel %vm421, %v408, 0
        %449 = vmatpush.bf16.msra.mxu0 0
        %450 = vmatpush.bf16.msra.mxu0 0
        %451 = vmatpush.bf16.msra.mxu0 0
        %452 = vmatpush.bf16.msra.mxu0 0
        %453 = vmatpush.bf16.msra.mxu0 0
        %454 = vmatpush.bf16.msra.mxu0 0
        %455 = vmatpush.bf16.msra.mxu0 %v418
        %456 = vmatpush.bf16.msra.mxu0 %v417
        %457 = vmatmul.bf16.gmra.mxu0 %v423
        %v458 = vpop.f32.mrf.mxu0
        %v459 = vadd.f32 0.0, %v458
        %v460 = vpop.f32.mrf.mxu0
        %v461 = vadd.f32 0.0, %v460
        %462 = vmatmul.bf16.gmra.mxu0 %v426
        %v463 = vpop.f32.mrf.mxu0
        %v464 = vadd.f32 0.0, %v463
        %v465 = vpop.f32.mrf.mxu0
        %v466 = vadd.f32 0.0, %v465
        %467 = vmatmul.bf16.gmra.mxu0 %v429
        %v468 = vpop.f32.mrf.mxu0
        %v469 = vadd.f32 0.0, %v468
        %v470 = vpop.f32.mrf.mxu0
        %v471 = vadd.f32 0.0, %v470
        %472 = vmatmul.bf16.gmra.mxu0 %v432
        %v473 = vpop.f32.mrf.mxu0
        %v474 = vadd.f32 0.0, %v473
        %v475 = vpop.f32.mrf.mxu0
        %v476 = vadd.f32 0.0, %v475
        %477 = vmatmul.bf16.gmra.mxu0 %v435
        %v478 = vpop.f32.mrf.mxu0
        %v479 = vadd.f32 0.0, %v478
        %v480 = vpop.f32.mrf.mxu0
        %v481 = vadd.f32 0.0, %v480
        %482 = vmatmul.bf16.gmra.mxu0 %v438
        %v483 = vpop.f32.mrf.mxu0
        %v484 = vadd.f32 0.0, %v483
        %v485 = vpop.f32.mrf.mxu0
        %v486 = vadd.f32 0.0, %v485
        %487 = vmatmul.bf16.gmra.mxu0 %v441
        %v488 = vpop.f32.mrf.mxu0
        %v489 = vadd.f32 0.0, %v488
        %v490 = vpop.f32.mrf.mxu0
        %v491 = vadd.f32 0.0, %v490
        %492 = vmatmul.bf16.gmra.mxu0 %v444
        %v493 = vpop.f32.mrf.mxu0
        %v494 = vadd.f32 0.0, %v493
        %v495 = vpop.f32.mrf.mxu0
        %v496 = vadd.f32 0.0, %v495
        %497 = vmatmul.bf16.gmra.mxu0 %v447
        %v498 = vpop.f32.mrf.mxu0
        %v499 = vadd.f32 0.0, %v498
        %v500 = vpop.f32.mrf.mxu0
        %v501 = vadd.f32 0.0, %v500
        %502 = vdwg.mxu0
        %v504 = vunpack.c.l.b16 %v337
        %v505 = vpack.c.b16 %v382, %v504
        %v506 = vpack.c.b16 %v384, %v383
        %v507 = vpack.c.b16 %v386, %v385
        %v508 = vpack.c.b16 %v388, %v387
        %v509 = vpack.c.b16 %v390, %v389
        %v510 = vpack.c.b16 %v392, %v391
        %v511 = vpack.c.b16 %v394, %v393
        %v512 = vpack.c.b16 %v396, %v395
        %v513 = vpack.c.b16 %v398, %v397
        %v514 = vpack.c.b16 %v399, %v399
        %vm515 = vsmask.f32 4352
        %v517 = vshrl.u32 %v505, 16
        %v519 = vrot.slane %v517, 3
        %v520 = vshll.u32 %v505, 16
        %v522 = vrot.slane %v520, 4
        %v523 = vor.u32 %v519, %v522
        %v525 = vshrl.u32 %v506, 16
        %v527 = vrot.slane %v525, 3
        %v528 = vshll.u32 %v506, 16
        %v530 = vrot.slane %v528, 4
        %v531 = vor.u32 %v527, %v530
        %v532 = vsel %vm515, %v523, %v531
        %v534 = vshrl.u32 %v507, 16
        %v536 = vrot.slane %v534, 3
        %v537 = vshll.u32 %v507, 16
        %v539 = vrot.slane %v537, 4
        %v540 = vor.u32 %v536, %v539
        %v541 = vsel %vm515, %v531, %v540
        %v543 = vshrl.u32 %v508, 16
        %v545 = vrot.slane %v543, 3
        %v546 = vshll.u32 %v508, 16
        %v548 = vrot.slane %v546, 4
        %v549 = vor.u32 %v545, %v548
        %v550 = vsel %vm515, %v540, %v549
        %v552 = vshrl.u32 %v509, 16
        %v554 = vrot.slane %v552, 3
        %v555 = vshll.u32 %v509, 16
        %v557 = vrot.slane %v555, 4
        %v558 = vor.u32 %v554, %v557
        %v559 = vsel %vm515, %v549, %v558
        %v561 = vshrl.u32 %v510, 16
        %v563 = vrot.slane %v561, 3
        %v564 = vshll.u32 %v510, 16
        %v566 = vrot.slane %v564, 4
        %v567 = vor.u32 %v563, %v566
        %v568 = vsel %vm515, %v558, %v567
        %v570 = vshrl.u32 %v511, 16
        %v572 = vrot.slane %v570, 3
        %v573 = vshll.u32 %v511, 16
        %v575 = vrot.slane %v573, 4
        %v576 = vor.u32 %v572, %v575
        %v577 = vsel %vm515, %v567, %v576
        %v579 = vshrl.u32 %v512, 16
        %v581 = vrot.slane %v579, 3
        %v582 = vshll.u32 %v512, 16
        %v584 = vrot.slane %v582, 4
        %v585 = vor.u32 %v581, %v584
        %v586 = vsel %vm515, %v576, %v585
        %v588 = vshrl.u32 %v513, 16
        %v590 = vrot.slane %v588, 3
        %v591 = vshll.u32 %v513, 16
        %v593 = vrot.slane %v591, 4
        %v594 = vor.u32 %v590, %v593
        %v595 = vsel %vm515, %v585, %v594
        %v597 = vshrl.u32 %v514, 16
        %v599 = vrot.slane %v597, 3
        %v600 = vshll.u32 %v514, 16
        %v602 = vrot.slane %v600, 4
        %v603 = vor.u32 %v599, %v602
        %v604 = vsel %vm515, %v594, %v603
        %v609 = vunpack.c.l.b16 %v356
        %v610 = vunpack.c.l.b16 %v357
        %v611 = vunpack.c.l.b16 %v358
        %v612 = vunpack.c.l.b16 %v359
        %v613 = vpack.c.b16 %v610, %v609
        %v614 = vpack.c.b16 %v612, %v611
        %v618 = vsel %vm421, %v532, 0
        %v621 = vsel %vm421, %v541, 0
        %v624 = vsel %vm421, %v550, 0
        %v627 = vsel %vm421, %v559, 0
        %v630 = vsel %vm421, %v568, 0
        %v633 = vsel %vm421, %v577, 0
        %v636 = vsel %vm421, %v586, 0
        %v639 = vsel %vm421, %v595, 0
        %v642 = vsel %vm421, %v604, 0
        %644 = vmatpush.bf16.msra.mxu0 0
        %645 = vmatpush.bf16.msra.mxu0 0
        %646 = vmatpush.bf16.msra.mxu0 0
        %647 = vmatpush.bf16.msra.mxu0 0
        %648 = vmatpush.bf16.msra.mxu0 0
        %649 = vmatpush.bf16.msra.mxu0 0
        %650 = vmatpush.bf16.msra.mxu0 %v614
        %651 = vmatpush.bf16.msra.mxu0 %v613
        %652 = vmatmul.bf16.gmra.mxu0 %v618
        %v653 = vpop.f32.mrf.mxu0
        %v654 = vadd.f32 %v459, %v653
        %v655 = vpop.f32.mrf.mxu0
        %v656 = vadd.f32 %v461, %v655
        %657 = vmatmul.bf16.gmra.mxu0 %v621
        %v658 = vpop.f32.mrf.mxu0
        %v659 = vadd.f32 %v464, %v658
        %v660 = vpop.f32.mrf.mxu0
        %v661 = vadd.f32 %v466, %v660
        %662 = vmatmul.bf16.gmra.mxu0 %v624
        %v663 = vpop.f32.mrf.mxu0
        %v664 = vadd.f32 %v469, %v663
        %v665 = vpop.f32.mrf.mxu0
        %v666 = vadd.f32 %v471, %v665
        %667 = vmatmul.bf16.gmra.mxu0 %v627
        %v668 = vpop.f32.mrf.mxu0
        %v669 = vadd.f32 %v474, %v668
        %v670 = vpop.f32.mrf.mxu0
        %v671 = vadd.f32 %v476, %v670
        %672 = vmatmul.bf16.gmra.mxu0 %v630
        %v673 = vpop.f32.mrf.mxu0
        %v674 = vadd.f32 %v479, %v673
        %v675 = vpop.f32.mrf.mxu0
        %v676 = vadd.f32 %v481, %v675
        %677 = vmatmul.bf16.gmra.mxu0 %v633
        %v678 = vpop.f32.mrf.mxu0
        %v679 = vadd.f32 %v484, %v678
        %v680 = vpop.f32.mrf.mxu0
        %v681 = vadd.f32 %v486, %v680
        %682 = vmatmul.bf16.gmra.mxu0 %v636
        %v683 = vpop.f32.mrf.mxu0
        %v684 = vadd.f32 %v489, %v683
        %v685 = vpop.f32.mrf.mxu0
        %v686 = vadd.f32 %v491, %v685
        %687 = vmatmul.bf16.gmra.mxu0 %v639
        %v688 = vpop.f32.mrf.mxu0
        %v689 = vadd.f32 %v494, %v688
        %v690 = vpop.f32.mrf.mxu0
        %v691 = vadd.f32 %v496, %v690
        %692 = vmatmul.bf16.gmra.mxu0 %v642
        %v693 = vpop.f32.mrf.mxu0
        %v694 = vadd.f32 %v499, %v693
        %v695 = vpop.f32.mrf.mxu0
        %v696 = vadd.f32 %v501, %v695
        %697 = vdwg.mxu0
        %v698 = vld [vmem:[#allocation2 + $0x4] sm:$0xf]
        %v699 = vld [vmem:[#allocation2 + $0x8] sm:$0xf]
        %v700 = vld [vmem:[#allocation2 + $0xc] sm:$0xf]
        %v701 = vld [vmem:[#allocation2 + $0x10] sm:$0xf]
        %v702 = vld [vmem:[#allocation2 + $0x14] sm:$0xf]
        %v703 = vld [vmem:[#allocation2 + $0x18] sm:$0xf]
        %v704 = vld [vmem:[#allocation2 + $0x1c] sm:$0xf]
        %v705 = vld [vmem:[#allocation2 + $0x20] sm:$0xf]
        %v706 = vld [vmem:[#allocation2 + $0x24] sm:$0xf]
        %v707 = vld [vmem:[#allocation2 + $0x28] sm:$0xf]
        %v708 = vld [vmem:[#allocation2 + $0x2c] sm:$0xf]
        %v709 = vld [vmem:[#allocation2 + $0x30] sm:$0xf]
        %v710 = vld [vmem:[#allocation2 + $0x34] sm:$0xf]
        %v711 = vld [vmem:[#allocation2 + $0x38] sm:$0xf]
        %v712 = vld [vmem:[#allocation2 + $0x3c] sm:$0xf]
        %v713 = vld [vmem:[#allocation2 + $0x40] sm:$0xf]
        %v714 = vld [vmem:[#allocation2 + $0x44] sm:$0xf]
        %v715 = vld [vmem:[#allocation2 + $0x48] sm:$0xf]
        %v716 = vld [vmem:[#allocation2 + $0x4c] sm:$0x1]
        %v717 = vld [vmem:[%s1 + $0x20] sm:$0xf]
        %v718 = vld [vmem:[%s1 + $0x24] sm:$0xf]
        %v719 = vld [vmem:[%s1 + $0x28] sm:$0xf]
        %v720 = vld [vmem:[%s1 + $0x2c] sm:$0xf]
        %v740 = vunpack.c.l.b16 %v698
        %v741 = vunpack.c.l.b16 %v699
        %v742 = vunpack.c.l.b16 %v700
        %v743 = vunpack.c.l.b16 %v701
        %v744 = vunpack.c.l.b16 %v702
        %v745 = vunpack.c.l.b16 %v703
        %v746 = vunpack.c.l.b16 %v704
        %v747 = vunpack.c.l.b16 %v705
        %v748 = vunpack.c.l.b16 %v706
        %v749 = vunpack.c.l.b16 %v707
        %v750 = vunpack.c.l.b16 %v708
        %v751 = vunpack.c.l.b16 %v709
        %v752 = vunpack.c.l.b16 %v710
        %v753 = vunpack.c.l.b16 %v711
        %v754 = vunpack.c.l.b16 %v712
        %v755 = vunpack.c.l.b16 %v713
        %v756 = vunpack.c.l.b16 %v714
        %v757 = vunpack.c.l.b16 %v715
        %v758 = vunpack.c.l.b16 %v716
        %v759 = vpack.c.b16 %v741, %v740
        %v760 = vpack.c.b16 %v743, %v742
        %v761 = vpack.c.b16 %v745, %v744
        %v762 = vpack.c.b16 %v747, %v746
        %v763 = vpack.c.b16 %v749, %v748
        %v764 = vpack.c.b16 %v751, %v750
        %v765 = vpack.c.b16 %v753, %v752
        %v766 = vpack.c.b16 %v755, %v754
        %v767 = vpack.c.b16 %v757, %v756
        %v768 = vpack.c.b16 %v758, %v758
        %vm769 = vsmask.f32 7424
        %v771 = vshrl.u32 %v759, 16
        %v773 = vshll.u32 %v759, 16
        %v775 = vrot.slane %v773, 1
        %v776 = vor.u32 %v771, %v775
        %v778 = vshll.u32 %v760, 16
        %v780 = vrot.slane %v778, 1
        %v781 = vsel %vm769, %v776, %v780
        %v782 = vshrl.u32 %v760, 16
        %v784 = vor.u32 %v782, %v780
        %v786 = vshll.u32 %v761, 16
        %v788 = vrot.slane %v786, 1
        %v789 = vsel %vm769, %v784, %v788
        %v790 = vshrl.u32 %v761, 16
        %v792 = vor.u32 %v790, %v788
        %v794 = vshll.u32 %v762, 16
        %v796 = vrot.slane %v794, 1
        %v797 = vsel %vm769, %v792, %v796
        %v798 = vshrl.u32 %v762, 16
        %v800 = vor.u32 %v798, %v796
        %v802 = vshll.u32 %v763, 16
        %v804 = vrot.slane %v802, 1
        %v805 = vsel %vm769, %v800, %v804
        %v806 = vshrl.u32 %v763, 16
        %v808 = vor.u32 %v806, %v804
        %v810 = vshll.u32 %v764, 16
        %v812 = vrot.slane %v810, 1
        %v813 = vsel %vm769, %v808, %v812
        %v814 = vshrl.u32 %v764, 16
        %v816 = vor.u32 %v814, %v812
        %v818 = vshll.u32 %v765, 16
        %v820 = vrot.slane %v818, 1
        %v821 = vsel %vm769, %v816, %v820
        %v822 = vshrl.u32 %v765, 16
        %v824 = vor.u32 %v822, %v820
        %v826 = vshll.u32 %v766, 16
        %v828 = vrot.slane %v826, 1
        %v829 = vsel %vm769, %v824, %v828
        %v830 = vshrl.u32 %v766, 16
        %v832 = vor.u32 %v830, %v828
        %v834 = vshll.u32 %v767, 16
        %v836 = vrot.slane %v834, 1
        %v837 = vsel %vm769, %v832, %v836
        %v838 = vshrl.u32 %v767, 16
        %v840 = vor.u32 %v838, %v836
        %v842 = vshll.u32 %v768, 16
        %v844 = vrot.slane %v842, 1
        %v845 = vsel %vm769, %v840, %v844
        %v850 = vunpack.c.l.b16 %v717
        %v851 = vunpack.c.l.b16 %v718
        %v852 = vunpack.c.l.b16 %v719
        %v853 = vunpack.c.l.b16 %v720
        %v854 = vpack.c.b16 %v851, %v850
        %v855 = vpack.c.b16 %v853, %v852
        %v859 = vsel %vm421, %v781, 0
        %v862 = vsel %vm421, %v789, 0
        %v865 = vsel %vm421, %v797, 0
        %v868 = vsel %vm421, %v805, 0
        %v871 = vsel %vm421, %v813, 0
        %v874 = vsel %vm421, %v821, 0
        %v877 = vsel %vm421, %v829, 0
        %v880 = vsel %vm421, %v837, 0
        %v883 = vsel %vm421, %v845, 0
        %885 = vmatpush.bf16.msra.mxu0 0
        %886 = vmatpush.bf16.msra.mxu0 0
        %887 = vmatpush.bf16.msra.mxu0 0
        %888 = vmatpush.bf16.msra.mxu0 0
        %889 = vmatpush.bf16.msra.mxu0 0
        %890 = vmatpush.bf16.msra.mxu0 0
        %891 = vmatpush.bf16.msra.mxu0 %v855
        %892 = vmatpush.bf16.msra.mxu0 %v854
        %893 = vmatmul.bf16.gmra.mxu0 %v859
        %v894 = vpop.f32.mrf.mxu0
        %v895 = vadd.f32 0.0, %v894
        %v896 = vpop.f32.mrf.mxu0
        %v897 = vadd.f32 0.0, %v896
        %898 = vmatmul.bf16.gmra.mxu0 %v862
        %v899 = vpop.f32.mrf.mxu0
        %v900 = vadd.f32 0.0, %v899
        %v901 = vpop.f32.mrf.mxu0
        %v902 = vadd.f32 0.0, %v901
        %903 = vmatmul.bf16.gmra.mxu0 %v865
        %v904 = vpop.f32.mrf.mxu0
        %v905 = vadd.f32 0.0, %v904
        %v906 = vpop.f32.mrf.mxu0
        %v907 = vadd.f32 0.0, %v906
        %908 = vmatmul.bf16.gmra.mxu0 %v868
        %v909 = vpop.f32.mrf.mxu0
        %v910 = vadd.f32 0.0, %v909
        %v911 = vpop.f32.mrf.mxu0
        %v912 = vadd.f32 0.0, %v911
        %913 = vmatmul.bf16.gmra.mxu0 %v871
        %v914 = vpop.f32.mrf.mxu0
        %v915 = vadd.f32 0.0, %v914
        %v916 = vpop.f32.mrf.mxu0
        %v917 = vadd.f32 0.0, %v916
        %918 = vmatmul.bf16.gmra.mxu0 %v874
        %v919 = vpop.f32.mrf.mxu0
        %v920 = vadd.f32 0.0, %v919
        %v921 = vpop.f32.mrf.mxu0
        %v922 = vadd.f32 0.0, %v921
        %923 = vmatmul.bf16.gmra.mxu0 %v877
        %v924 = vpop.f32.mrf.mxu0
        %v925 = vadd.f32 0.0, %v924
        %v926 = vpop.f32.mrf.mxu0
        %v927 = vadd.f32 0.0, %v926
        %928 = vmatmul.bf16.gmra.mxu0 %v880
        %v929 = vpop.f32.mrf.mxu0
        %v930 = vadd.f32 0.0, %v929
        %v931 = vpop.f32.mrf.mxu0
        %v932 = vadd.f32 0.0, %v931
        %933 = vmatmul.bf16.gmra.mxu0 %v883
        %v934 = vpop.f32.mrf.mxu0
        %v935 = vadd.f32 0.0, %v934
        %v936 = vpop.f32.mrf.mxu0
        %v937 = vadd.f32 0.0, %v936
        %938 = vdwg.mxu0
        %v939 = vadd.f32 %v654, %v895
        %v940 = vadd.f32 %v656, %v897
        %v941 = vadd.f32 %v659, %v900
        %v942 = vadd.f32 %v661, %v902
        %v943 = vadd.f32 %v664, %v905
        %v944 = vadd.f32 %v666, %v907
        %v945 = vadd.f32 %v669, %v910
        %v946 = vadd.f32 %v671, %v912
        %v947 = vadd.f32 %v674, %v915
        %v948 = vadd.f32 %v676, %v917
        %v949 = vadd.f32 %v679, %v920
        %v950 = vadd.f32 %v681, %v922
        %v951 = vadd.f32 %v684, %v925
        %v952 = vadd.f32 %v686, %v927
        %v953 = vadd.f32 %v689, %v930
        %v954 = vadd.f32 %v691, %v932
        %v955 = vadd.f32 %v694, %v935
        %v956 = vadd.f32 %v696, %v937
        %v957 = vld [vmem:[#allocation2 + $0xc] sm:$0xf]
        %v958 = vld [vmem:[#allocation2 + $0x10] sm:$0xf]
        %v959 = vld [vmem:[#allocation2 + $0x14] sm:$0xf]
        %v960 = vld [vmem:[#allocation2 + $0x18] sm:$0xf]
        %v961 = vld [vmem:[#allocation2 + $0x1c] sm:$0xf]
        %v962 = vld [vmem:[#allocation2 + $0x20] sm:$0xf]
        %v963 = vld [vmem:[#allocation2 + $0x24] sm:$0xf]
        %v964 = vld [vmem:[#allocation2 + $0x28] sm:$0xf]
        %v965 = vld [vmem:[#allocation2 + $0x2c] sm:$0xf]
        %v966 = vld [vmem:[#allocation2 + $0x30] sm:$0xf]
        %v967 = vld [vmem:[#allocation2 + $0x34] sm:$0xf]
        %v968 = vld [vmem:[#allocation2 + $0x38] sm:$0xf]
        %v969 = vld [vmem:[#allocation2 + $0x3c] sm:$0xf]
        %v970 = vld [vmem:[#allocation2 + $0x40] sm:$0xf]
        %v971 = vld [vmem:[#allocation2 + $0x44] sm:$0xf]
        %v972 = vld [vmem:[#allocation2 + $0x48] sm:$0xf]
        %v973 = vld [vmem:[#allocation2 + $0x4c] sm:$0xf]
        %v974 = vld [vmem:[#allocation2 + $0x50] sm:$0xf]
        %v975 = vld [vmem:[#allocation2 + $0x54] sm:$0x1]
        %v976 = vld [vmem:[%s1 + $0x30] sm:$0xf]
        %v977 = vld [vmem:[%s1 + $0x34] sm:$0xf]
        %v978 = vld [vmem:[%s1 + $0x38] sm:$0xf]
        %v979 = vld [vmem:[%s1 + $0x3c] sm:$0xf]
        %v999 = vunpack.c.l.b16 %v957
        %v1000 = vunpack.c.l.b16 %v958
        %v1001 = vunpack.c.l.b16 %v959
        %v1002 = vunpack.c.l.b16 %v960
        %v1003 = vunpack.c.l.b16 %v961
        %v1004 = vunpack.c.l.b16 %v962
        %v1005 = vunpack.c.l.b16 %v963
        %v1006 = vunpack.c.l.b16 %v964
        %v1007 = vunpack.c.l.b16 %v965
        %v1008 = vunpack.c.l.b16 %v966
        %v1009 = vunpack.c.l.b16 %v967
        %v1010 = vunpack.c.l.b16 %v968
        %v1011 = vunpack.c.l.b16 %v969
        %v1012 = vunpack.c.l.b16 %v970
        %v1013 = vunpack.c.l.b16 %v971
        %v1014 = vunpack.c.l.b16 %v972
        %v1015 = vunpack.c.l.b16 %v973
        %v1016 = vunpack.c.l.b16 %v974
        %v1017 = vunpack.c.l.b16 %v975
        %v1018 = vpack.c.b16 %v1000, %v999
        %v1019 = vpack.c.b16 %v1002, %v1001
        %v1020 = vpack.c.b16 %v1004, %v1003
        %v1021 = vpack.c.b16 %v1006, %v1005
        %v1022 = vpack.c.b16 %v1008, %v1007
        %v1023 = vpack.c.b16 %v1010, %v1009
        %v1024 = vpack.c.b16 %v1012, %v1011
        %v1025 = vpack.c.b16 %v1014, %v1013
        %v1026 = vpack.c.b16 %v1016, %v1015
        %v1027 = vpack.c.b16 %v1017, %v1017
        %v1029 = vshrl.u32 %v1018, 16
        %v1031 = vshll.u32 %v1018, 16
        %v1033 = vrot.slane %v1031, 1
        %v1034 = vor.u32 %v1029, %v1033
        %v1036 = vshll.u32 %v1019, 16
        %v1038 = vrot.slane %v1036, 1
        %v1039 = vsel %vm769, %v1034, %v1038
        %v1040 = vshrl.u32 %v1019, 16
        %v1042 = vor.u32 %v1040, %v1038
        %v1044 = vshll.u32 %v1020, 16
        %v1046 = vrot.slane %v1044, 1
        %v1047 = vsel %vm769, %v1042, %v1046
        %v1048 = vshrl.u32 %v1020, 16
        %v1050 = vor.u32 %v1048, %v1046
        %v1052 = vshll.u32 %v1021, 16
        %v1054 = vrot.slane %v1052, 1
        %v1055 = vsel %vm769, %v1050, %v1054
        %v1056 = vshrl.u32 %v1021, 16
        %v1058 = vor.u32 %v1056, %v1054
        %v1060 = vshll.u32 %v1022, 16
        %v1062 = vrot.slane %v1060, 1
        %v1063 = vsel %vm769, %v1058, %v1062
        %v1064 = vshrl.u32 %v1022, 16
        %v1066 = vor.u32 %v1064, %v1062
        %v1068 = vshll.u32 %v1023, 16
        %v1070 = vrot.slane %v1068, 1
        %v1071 = vsel %vm769, %v1066, %v1070
        %v1072 = vshrl.u32 %v1023, 16
        %v1074 = vor.u32 %v1072, %v1070
        %v1076 = vshll.u32 %v1024, 16
        %v1078 = vrot.slane %v1076, 1
        %v1079 = vsel %vm769, %v1074, %v1078
        %v1080 = vshrl.u32 %v1024, 16
        %v1082 = vor.u32 %v1080, %v1078
        %v1084 = vshll.u32 %v1025, 16
        %v1086 = vrot.slane %v1084, 1
        %v1087 = vsel %vm769, %v1082, %v1086
        %v1088 = vshrl.u32 %v1025, 16
        %v1090 = vor.u32 %v1088, %v1086
        %v1092 = vshll.u32 %v1026, 16
        %v1094 = vrot.slane %v1092, 1
        %v1095 = vsel %vm769, %v1090, %v1094
        %v1096 = vshrl.u32 %v1026, 16
        %v1098 = vor.u32 %v1096, %v1094
        %v1100 = vshll.u32 %v1027, 16
        %v1102 = vrot.slane %v1100, 1
        %v1103 = vsel %vm769, %v1098, %v1102
        %v1108 = vunpack.c.l.b16 %v976
        %v1109 = vunpack.c.l.b16 %v977
        %v1110 = vunpack.c.l.b16 %v978
        %v1111 = vunpack.c.l.b16 %v979
        %v1112 = vpack.c.b16 %v1109, %v1108
        %v1113 = vpack.c.b16 %v1111, %v1110
        %v1117 = vsel %vm421, %v1039, 0
        %v1120 = vsel %vm421, %v1047, 0
        %v1123 = vsel %vm421, %v1055, 0
        %v1126 = vsel %vm421, %v1063, 0
        %v1129 = vsel %vm421, %v1071, 0
        %v1132 = vsel %vm421, %v1079, 0
        %v1135 = vsel %vm421, %v1087, 0
        %v1138 = vsel %vm421, %v1095, 0
        %v1141 = vsel %vm421, %v1103, 0
        %1143 = vmatpush.bf16.msra.mxu0 0
        %1144 = vmatpush.bf16.msra.mxu0 0
        %1145 = vmatpush.bf16.msra.mxu0 0
        %1146 = vmatpush.bf16.msra.mxu0 0
        %1147 = vmatpush.bf16.msra.mxu0 0
        %1148 = vmatpush.bf16.msra.mxu0 0
        %1149 = vmatpush.bf16.msra.mxu0 %v1113
        %1150 = vmatpush.bf16.msra.mxu0 %v1112
        %1151 = vmatmul.bf16.gmra.mxu0 %v1117
        %v1152 = vpop.f32.mrf.mxu0
        %v1153 = vadd.f32 0.0, %v1152
        %v1154 = vpop.f32.mrf.mxu0
        %v1155 = vadd.f32 0.0, %v1154
        %1156 = vmatmul.bf16.gmra.mxu0 %v1120
        %v1157 = vpop.f32.mrf.mxu0
        %v1158 = vadd.f32 0.0, %v1157
        %v1159 = vpop.f32.mrf.mxu0
        %v1160 = vadd.f32 0.0, %v1159
        %1161 = vmatmul.bf16.gmra.mxu0 %v1123
        %v1162 = vpop.f32.mrf.mxu0
        %v1163 = vadd.f32 0.0, %v1162
        %v1164 = vpop.f32.mrf.mxu0
        %v1165 = vadd.f32 0.0, %v1164
        %1166 = vmatmul.bf16.gmra.mxu0 %v1126
        %v1167 = vpop.f32.mrf.mxu0
        %v1168 = vadd.f32 0.0, %v1167
        %v1169 = vpop.f32.mrf.mxu0
        %v1170 = vadd.f32 0.0, %v1169
        %1171 = vmatmul.bf16.gmra.mxu0 %v1129
        %v1172 = vpop.f32.mrf.mxu0
        %v1173 = vadd.f32 0.0, %v1172
        %v1174 = vpop.f32.mrf.mxu0
        %v1175 = vadd.f32 0.0, %v1174
        %1176 = vmatmul.bf16.gmra.mxu0 %v1132
        %v1177 = vpop.f32.mrf.mxu0
        %v1178 = vadd.f32 0.0, %v1177
        %v1179 = vpop.f32.mrf.mxu0
        %v1180 = vadd.f32 0.0, %v1179
        %1181 = vmatmul.bf16.gmra.mxu0 %v1135
        %v1182 = vpop.f32.mrf.mxu0
        %v1183 = vadd.f32 0.0, %v1182
        %v1184 = vpop.f32.mrf.mxu0
        %v1185 = vadd.f32 0.0, %v1184
        %1186 = vmatmul.bf16.gmra.mxu0 %v1138
        %v1187 = vpop.f32.mrf.mxu0
        %v1188 = vadd.f32 0.0, %v1187
        %v1189 = vpop.f32.mrf.mxu0
        %v1190 = vadd.f32 0.0, %v1189
        %1191 = vmatmul.bf16.gmra.mxu0 %v1141
        %v1192 = vpop.f32.mrf.mxu0
        %v1193 = vadd.f32 0.0, %v1192
        %v1194 = vpop.f32.mrf.mxu0
        %v1195 = vadd.f32 0.0, %v1194
        %1196 = vdwg.mxu0
        %v1197 = vadd.f32 %v939, %v1153
        %v1198 = vadd.f32 %v940, %v1155
        %v1199 = vadd.f32 %v941, %v1158
        %v1200 = vadd.f32 %v942, %v1160
        %v1201 = vadd.f32 %v943, %v1163
        %v1202 = vadd.f32 %v944, %v1165
        %v1203 = vadd.f32 %v945, %v1168
        %v1204 = vadd.f32 %v946, %v1170
        %v1205 = vadd.f32 %v947, %v1173
        %v1206 = vadd.f32 %v948, %v1175
        %v1207 = vadd.f32 %v949, %v1178
        %v1208 = vadd.f32 %v950, %v1180
        %v1209 = vadd.f32 %v951, %v1183
        %v1210 = vadd.f32 %v952, %v1185
        %v1211 = vadd.f32 %v953, %v1188
        %v1212 = vadd.f32 %v954, %v1190
        %v1213 = vadd.f32 %v955, %v1193
        %v1214 = vadd.f32 %v956, %v1195
        %v1215 = vld [vmem:[#allocation2 + $0xc] sm:$0xe]
        %v1216 = vld [vmem:[%s1 + $0x40] sm:$0xf]
        %v1217 = vld [vmem:[%s1 + $0x44] sm:$0xf]
        %v1218 = vld [vmem:[%s1 + $0x48] sm:$0xf]
        %v1219 = vld [vmem:[%s1 + $0x4c] sm:$0xf]
        %v1221 = vunpack.c.l.b16 %v1215
        %v1222 = vpack.c.b16 %v1000, %v1221
        %vm1223 = vcmask 1046528
        %v1224 = vrot.slane %v1222, 1
        %v1225 = vrot.slane %v1019, 1
        %v1226 = vsel %vm1223, %v1224, %v1225
        %v1227 = vrot.slane %v1020, 1
        %v1228 = vsel %vm1223, %v1225, %v1227
        %v1229 = vrot.slane %v1021, 1
        %v1230 = vsel %vm1223, %v1227, %v1229
        %v1231 = vrot.slane %v1022, 1
        %v1232 = vsel %vm1223, %v1229, %v1231
        %v1233 = vrot.slane %v1023, 1
        %v1234 = vsel %vm1223, %v1231, %v1233
        %v1235 = vrot.slane %v1024, 1
        %v1236 = vsel %vm1223, %v1233, %v1235
        %v1237 = vrot.slane %v1025, 1
        %v1238 = vsel %vm1223, %v1235, %v1237
        %v1239 = vrot.slane %v1026, 1
        %v1240 = vsel %vm1223, %v1237, %v1239
        %v1241 = vrot.slane %v1027, 1
        %v1242 = vsel %vm1223, %v1239, %v1241
        %v1247 = vunpack.c.l.b16 %v1216
        %v1248 = vunpack.c.l.b16 %v1217
        %v1249 = vunpack.c.l.b16 %v1218
        %v1250 = vunpack.c.l.b16 %v1219
        %v1251 = vpack.c.b16 %v1248, %v1247
        %v1252 = vpack.c.b16 %v1250, %v1249
        %v1256 = vsel %vm421, %v1226, 0
        %v1259 = vsel %vm421, %v1228, 0
        %v1262 = vsel %vm421, %v1230, 0
        %v1265 = vsel %vm421, %v1232, 0
        %v1268 = vsel %vm421, %v1234, 0
        %v1271 = vsel %vm421, %v1236, 0
        %v1274 = vsel %vm421, %v1238, 0
        %v1277 = vsel %vm421, %v1240, 0
        %v1280 = vsel %vm421, %v1242, 0
        %1282 = vmatpush.bf16.msra.mxu0 0
        %1283 = vmatpush.bf16.msra.mxu0 0
        %1284 = vmatpush.bf16.msra.mxu0 0
        %1285 = vmatpush.bf16.msra.mxu0 0
        %1286 = vmatpush.bf16.msra.mxu0 0
        %1287 = vmatpush.bf16.msra.mxu0 0
        %1288 = vmatpush.bf16.msra.mxu0 %v1252
        %1289 = vmatpush.bf16.msra.mxu0 %v1251
        %1290 = vmatmul.bf16.gmra.mxu0 %v1256
        %v1291 = vpop.f32.mrf.mxu0
        %v1292 = vadd.f32 0.0, %v1291
        %v1293 = vpop.f32.mrf.mxu0
        %v1294 = vadd.f32 0.0, %v1293
        %1295 = vmatmul.bf16.gmra.mxu0 %v1259
        %v1296 = vpop.f32.mrf.mxu0
        %v1297 = vadd.f32 0.0, %v1296
        %v1298 = vpop.f32.mrf.mxu0
        %v1299 = vadd.f32 0.0, %v1298
        %1300 = vmatmul.bf16.gmra.mxu0 %v1262
        %v1301 = vpop.f32.mrf.mxu0
        %v1302 = vadd.f32 0.0, %v1301
        %v1303 = vpop.f32.mrf.mxu0
        %v1304 = vadd.f32 0.0, %v1303
        %1305 = vmatmul.bf16.gmra.mxu0 %v1265
        %v1306 = vpop.f32.mrf.mxu0
        %v1307 = vadd.f32 0.0, %v1306
        %v1308 = vpop.f32.mrf.mxu0
        %v1309 = vadd.f32 0.0, %v1308
        %1310 = vmatmul.bf16.gmra.mxu0 %v1268
        %v1311 = vpop.f32.mrf.mxu0
        %v1312 = vadd.f32 0.0, %v1311
        %v1313 = vpop.f32.mrf.mxu0
        %v1314 = vadd.f32 0.0, %v1313
        %1315 = vmatmul.bf16.gmra.mxu0 %v1271
        %v1316 = vpop.f32.mrf.mxu0
        %v1317 = vadd.f32 0.0, %v1316
        %v1318 = vpop.f32.mrf.mxu0
        %v1319 = vadd.f32 0.0, %v1318
        %1320 = vmatmul.bf16.gmra.mxu0 %v1274
        %v1321 = vpop.f32.mrf.mxu0
        %v1322 = vadd.f32 0.0, %v1321
        %v1323 = vpop.f32.mrf.mxu0
        %v1324 = vadd.f32 0.0, %v1323
        %1325 = vmatmul.bf16.gmra.mxu0 %v1277
        %v1326 = vpop.f32.mrf.mxu0
        %v1327 = vadd.f32 0.0, %v1326
        %v1328 = vpop.f32.mrf.mxu0
        %v1329 = vadd.f32 0.0, %v1328
        %1330 = vmatmul.bf16.gmra.mxu0 %v1280
        %v1331 = vpop.f32.mrf.mxu0
        %v1332 = vadd.f32 0.0, %v1331
        %v1333 = vpop.f32.mrf.mxu0
        %v1334 = vadd.f32 0.0, %v1333
        %1335 = vdwg.mxu0
        %v1336 = vadd.f32 %v1197, %v1292
        %v1337 = vadd.f32 %v1198, %v1294
        %v1338 = vadd.f32 %v1199, %v1297
        %v1339 = vadd.f32 %v1200, %v1299
        %v1340 = vadd.f32 %v1201, %v1302
        %v1341 = vadd.f32 %v1202, %v1304
        %v1342 = vadd.f32 %v1203, %v1307
        %v1343 = vadd.f32 %v1204, %v1309
        %v1344 = vadd.f32 %v1205, %v1312
        %v1345 = vadd.f32 %v1206, %v1314
        %v1346 = vadd.f32 %v1207, %v1317
        %v1347 = vadd.f32 %v1208, %v1319
        %v1348 = vadd.f32 %v1209, %v1322
        %v1349 = vadd.f32 %v1210, %v1324
        %v1350 = vadd.f32 %v1211, %v1327
        %v1351 = vadd.f32 %v1212, %v1329
        %v1352 = vadd.f32 %v1213, %v1332
        %v1353 = vadd.f32 %v1214, %v1334
        %v1354 = vld [vmem:[#allocation2 + $0x54] sm:$0x3]
        %v1355 = vld [vmem:[%s1 + $0x50] sm:$0xf]
        %v1356 = vld [vmem:[%s1 + $0x54] sm:$0xf]
        %v1357 = vld [vmem:[%s1 + $0x58] sm:$0xf]
        %v1358 = vld [vmem:[%s1 + $0x5c] sm:$0xf]
        %v1360 = vunpack.c.l.b16 %v1354
        %v1361 = vpack.c.b16 %v1360, %v1360
        %vm1362 = vsmask.f32 6400
        %v1364 = vshrl.u32 %v1222, 16
        %v1366 = vrot.slane %v1364, 1
        %v1367 = vshll.u32 %v1222, 16
        %v1369 = vrot.slane %v1367, 2
        %v1370 = vor.u32 %v1366, %v1369
        %v1371 = vrot.slane %v1040, 1
        %v1372 = vrot.slane %v1036, 2
        %v1373 = vor.u32 %v1371, %v1372
        %v1374 = vsel %vm1362, %v1370, %v1373
        %v1375 = vrot.slane %v1048, 1
        %v1376 = vrot.slane %v1044, 2
        %v1377 = vor.u32 %v1375, %v1376
        %v1378 = vsel %vm1362, %v1373, %v1377
        %v1379 = vrot.slane %v1056, 1
        %v1380 = vrot.slane %v1052, 2
        %v1381 = vor.u32 %v1379, %v1380
        %v1382 = vsel %vm1362, %v1377, %v1381
        %v1383 = vrot.slane %v1064, 1
        %v1384 = vrot.slane %v1060, 2
        %v1385 = vor.u32 %v1383, %v1384
        %v1386 = vsel %vm1362, %v1381, %v1385
        %v1387 = vrot.slane %v1072, 1
        %v1388 = vrot.slane %v1068, 2
        %v1389 = vor.u32 %v1387, %v1388
        %v1390 = vsel %vm1362, %v1385, %v1389
        %v1391 = vrot.slane %v1080, 1
        %v1392 = vrot.slane %v1076, 2
        %v1393 = vor.u32 %v1391, %v1392
        %v1394 = vsel %vm1362, %v1389, %v1393
        %v1395 = vrot.slane %v1088, 1
        %v1396 = vrot.slane %v1084, 2
        %v1397 = vor.u32 %v1395, %v1396
        %v1398 = vsel %vm1362, %v1393, %v1397
        %v1399 = vrot.slane %v1096, 1
        %v1400 = vrot.slane %v1092, 2
        %v1401 = vor.u32 %v1399, %v1400
        %v1402 = vsel %vm1362, %v1397, %v1401
        %v1404 = vshrl.u32 %v1361, 16
        %v1406 = vrot.slane %v1404, 1
        %v1407 = vshll.u32 %v1361, 16
        %v1409 = vrot.slane %v1407, 2
        %v1410 = vor.u32 %v1406, %v1409
        %v1411 = vsel %vm1362, %v1401, %v1410
        %v1416 = vunpack.c.l.b16 %v1355
        %v1417 = vunpack.c.l.b16 %v1356
        %v1418 = vunpack.c.l.b16 %v1357
        %v1419 = vunpack.c.l.b16 %v1358
        %v1420 = vpack.c.b16 %v1417, %v1416
        %v1421 = vpack.c.b16 %v1419, %v1418
        %v1425 = vsel %vm421, %v1374, 0
        %v1428 = vsel %vm421, %v1378, 0
        %v1431 = vsel %vm421, %v1382, 0
        %v1434 = vsel %vm421, %v1386, 0
        %v1437 = vsel %vm421, %v1390, 0
        %v1440 = vsel %vm421, %v1394, 0
        %v1443 = vsel %vm421, %v1398, 0
        %v1446 = vsel %vm421, %v1402, 0
        %v1449 = vsel %vm421, %v1411, 0
        %1451 = vmatpush.bf16.msra.mxu0 0
        %1452 = vmatpush.bf16.msra.mxu0 0
        %1453 = vmatpush.bf16.msra.mxu0 0
        %1454 = vmatpush.bf16.msra.mxu0 0
        %1455 = vmatpush.bf16.msra.mxu0 0
        %1456 = vmatpush.bf16.msra.mxu0 0
        %1457 = vmatpush.bf16.msra.mxu0 %v1421
        %1458 = vmatpush.bf16.msra.mxu0 %v1420
        %1459 = vmatmul.bf16.gmra.mxu0 %v1425
        %v1460 = vpop.f32.mrf.mxu0
        %v1461 = vadd.f32 0.0, %v1460
        %v1462 = vpop.f32.mrf.mxu0
        %v1463 = vadd.f32 0.0, %v1462
        %1464 = vmatmul.bf16.gmra.mxu0 %v1428
        %v1465 = vpop.f32.mrf.mxu0
        %v1466 = vadd.f32 0.0, %v1465
        %v1467 = vpop.f32.mrf.mxu0
        %v1468 = vadd.f32 0.0, %v1467
        %1469 = vmatmul.bf16.gmra.mxu0 %v1431
        %v1470 = vpop.f32.mrf.mxu0
        %v1471 = vadd.f32 0.0, %v1470
        %v1472 = vpop.f32.mrf.mxu0
        %v1473 = vadd.f32 0.0, %v1472
        %1474 = vmatmul.bf16.gmra.mxu0 %v1434
        %v1475 = vpop.f32.mrf.mxu0
        %v1476 = vadd.f32 0.0, %v1475
        %v1477 = vpop.f32.mrf.mxu0
        %v1478 = vadd.f32 0.0, %v1477
        %1479 = vmatmul.bf16.gmra.mxu0 %v1437
        %v1480 = vpop.f32.mrf.mxu0
        %v1481 = vadd.f32 0.0, %v1480
        %v1482 = vpop.f32.mrf.mxu0
        %v1483 = vadd.f32 0.0, %v1482
        %1484 = vmatmul.bf16.gmra.mxu0 %v1440
        %v1485 = vpop.f32.mrf.mxu0
        %v1486 = vadd.f32 0.0, %v1485
        %v1487 = vpop.f32.mrf.mxu0
        %v1488 = vadd.f32 0.0, %v1487
        %1489 = vmatmul.bf16.gmra.mxu0 %v1443
        %v1490 = vpop.f32.mrf.mxu0
        %v1491 = vadd.f32 0.0, %v1490
        %v1492 = vpop.f32.mrf.mxu0
        %v1493 = vadd.f32 0.0, %v1492
        %1494 = vmatmul.bf16.gmra.mxu0 %v1446
        %v1495 = vpop.f32.mrf.mxu0
        %v1496 = vadd.f32 0.0, %v1495
        %v1497 = vpop.f32.mrf.mxu0
        %v1498 = vadd.f32 0.0, %v1497
        %1499 = vmatmul.bf16.gmra.mxu0 %v1449
        %v1500 = vpop.f32.mrf.mxu0
        %v1501 = vadd.f32 0.0, %v1500
        %v1502 = vpop.f32.mrf.mxu0
        %v1503 = vadd.f32 0.0, %v1502
        %1504 = vdwg.mxu0
        %v1505 = vadd.f32 %v1336, %v1461
        %v1506 = vadd.f32 %v1337, %v1463
        %v1507 = vadd.f32 %v1338, %v1466
        %v1508 = vadd.f32 %v1339, %v1468
        %v1509 = vadd.f32 %v1340, %v1471
        %v1510 = vadd.f32 %v1341, %v1473
        %v1511 = vadd.f32 %v1342, %v1476
        %v1512 = vadd.f32 %v1343, %v1478
        %v1513 = vadd.f32 %v1344, %v1481
        %v1514 = vadd.f32 %v1345, %v1483
        %v1515 = vadd.f32 %v1346, %v1486
        %v1516 = vadd.f32 %v1347, %v1488
        %v1517 = vadd.f32 %v1348, %v1491
        %v1518 = vadd.f32 %v1349, %v1493
        %v1519 = vadd.f32 %v1350, %v1496
        %v1520 = vadd.f32 %v1351, %v1498
        %v1521 = vadd.f32 %v1352, %v1501
        %v1522 = vadd.f32 %v1353, %v1503
        %v1523 = vld [vmem:[#allocation2 + $0x14] sm:$0xe]
        %v1524 = vld [vmem:[#allocation2 + $0x18] sm:$0xf]
        %v1525 = vld [vmem:[#allocation2 + $0x1c] sm:$0xf]
        %v1526 = vld [vmem:[#allocation2 + $0x20] sm:$0xf]
        %v1527 = vld [vmem:[#allocation2 + $0x24] sm:$0xf]
        %v1528 = vld [vmem:[#allocation2 + $0x28] sm:$0xf]
        %v1529 = vld [vmem:[#allocation2 + $0x2c] sm:$0xf]
        %v1530 = vld [vmem:[#allocation2 + $0x30] sm:$0xf]
        %v1531 = vld [vmem:[#allocation2 + $0x34] sm:$0xf]
        %v1532 = vld [vmem:[#allocation2 + $0x38] sm:$0xf]
        %v1533 = vld [vmem:[#allocation2 + $0x3c] sm:$0xf]
        %v1534 = vld [vmem:[#allocation2 + $0x40] sm:$0xf]
        %v1535 = vld [vmem:[#allocation2 + $0x44] sm:$0xf]
        %v1536 = vld [vmem:[#allocation2 + $0x48] sm:$0xf]
        %v1537 = vld [vmem:[#allocation2 + $0x4c] sm:$0xf]
        %v1538 = vld [vmem:[#allocation2 + $0x50] sm:$0xf]
        %v1539 = vld [vmem:[#allocation2 + $0x54] sm:$0xf]
        %v1540 = vld [vmem:[#allocation2 + $0x58] sm:$0xf]
        %v1541 = vld [vmem:[#allocation2 + $0x5c] sm:$0x3]
        %v1542 = vld [vmem:[%s1 + $0x60] sm:$0xf]
        %v1543 = vld [vmem:[%s1 + $0x64] sm:$0xf]
        %v1544 = vld [vmem:[%s1 + $0x68] sm:$0xf]
        %v1545 = vld [vmem:[%s1 + $0x6c] sm:$0xf]
        %v1565 = vunpack.c.l.b16 %v1523
        %v1566 = vunpack.c.l.b16 %v1524
        %v1567 = vunpack.c.l.b16 %v1525
        %v1568 = vunpack.c.l.b16 %v1526
        %v1569 = vunpack.c.l.b16 %v1527
        %v1570 = vunpack.c.l.b16 %v1528
        %v1571 = vunpack.c.l.b16 %v1529
        %v1572 = vunpack.c.l.b16 %v1530
        %v1573 = vunpack.c.l.b16 %v1531
        %v1574 = vunpack.c.l.b16 %v1532
        %v1575 = vunpack.c.l.b16 %v1533
        %v1576 = vunpack.c.l.b16 %v1534
        %v1577 = vunpack.c.l.b16 %v1535
        %v1578 = vunpack.c.l.b16 %v1536
        %v1579 = vunpack.c.l.b16 %v1537
        %v1580 = vunpack.c.l.b16 %v1538
        %v1581 = vunpack.c.l.b16 %v1539
        %v1582 = vunpack.c.l.b16 %v1540
        %v1583 = vunpack.c.l.b16 %v1541
        %v1584 = vpack.c.b16 %v1566, %v1565
        %v1585 = vpack.c.b16 %v1568, %v1567
        %v1586 = vpack.c.b16 %v1570, %v1569
        %v1587 = vpack.c.b16 %v1572, %v1571
        %v1588 = vpack.c.b16 %v1574, %v1573
        %v1589 = vpack.c.b16 %v1576, %v1575
        %v1590 = vpack.c.b16 %v1578, %v1577
        %v1591 = vpack.c.b16 %v1580, %v1579
        %v1592 = vpack.c.b16 %v1582, %v1581
        %v1593 = vpack.c.b16 %v1583, %v1583
        %v1595 = vshrl.u32 %v1584, 16
        %v1597 = vrot.slane %v1595, 1
        %v1598 = vshll.u32 %v1584, 16
        %v1600 = vrot.slane %v1598, 2
        %v1601 = vor.u32 %v1597, %v1600
        %v1603 = vshrl.u32 %v1585, 16
        %v1605 = vrot.slane %v1603, 1
        %v1606 = vshll.u32 %v1585, 16
        %v1608 = vrot.slane %v1606, 2
        %v1609 = vor.u32 %v1605, %v1608
        %v1610 = vsel %vm1362, %v1601, %v1609
        %v1612 = vshrl.u32 %v1586, 16
        %v1614 = vrot.slane %v1612, 1
        %v1615 = vshll.u32 %v1586, 16
        %v1617 = vrot.slane %v1615, 2
        %v1618 = vor.u32 %v1614, %v1617
        %v1619 = vsel %vm1362, %v1609, %v1618
        %v1621 = vshrl.u32 %v1587, 16
        %v1623 = vrot.slane %v1621, 1
        %v1624 = vshll.u32 %v1587, 16
        %v1626 = vrot.slane %v1624, 2
        %v1627 = vor.u32 %v1623, %v1626
        %v1628 = vsel %vm1362, %v1618, %v1627
        %v1630 = vshrl.u32 %v1588, 16
        %v1632 = vrot.slane %v1630, 1
        %v1633 = vshll.u32 %v1588, 16
        %v1635 = vrot.slane %v1633, 2
        %v1636 = vor.u32 %v1632, %v1635
        %v1637 = vsel %vm1362, %v1627, %v1636
        %v1639 = vshrl.u32 %v1589, 16
        %v1641 = vrot.slane %v1639, 1
        %v1642 = vshll.u32 %v1589, 16
        %v1644 = vrot.slane %v1642, 2
        %v1645 = vor.u32 %v1641, %v1644
        %v1646 = vsel %vm1362, %v1636, %v1645
        %v1648 = vshrl.u32 %v1590, 16
        %v1650 = vrot.slane %v1648, 1
        %v1651 = vshll.u32 %v1590, 16
        %v1653 = vrot.slane %v1651, 2
        %v1654 = vor.u32 %v1650, %v1653
        %v1655 = vsel %vm1362, %v1645, %v1654
        %v1657 = vshrl.u32 %v1591, 16
        %v1659 = vrot.slane %v1657, 1
        %v1660 = vshll.u32 %v1591, 16
        %v1662 = vrot.slane %v1660, 2
        %v1663 = vor.u32 %v1659, %v1662
        %v1664 = vsel %vm1362, %v1654, %v1663
        %v1666 = vshrl.u32 %v1592, 16
        %v1668 = vrot.slane %v1666, 1
        %v1669 = vshll.u32 %v1592, 16
        %v1671 = vrot.slane %v1669, 2
        %v1672 = vor.u32 %v1668, %v1671
        %v1673 = vsel %vm1362, %v1663, %v1672
        %v1675 = vshrl.u32 %v1593, 16
        %v1677 = vrot.slane %v1675, 1
        %v1678 = vshll.u32 %v1593, 16
        %v1680 = vrot.slane %v1678, 2
        %v1681 = vor.u32 %v1677, %v1680
        %v1682 = vsel %vm1362, %v1672, %v1681
        %v1687 = vunpack.c.l.b16 %v1542
        %v1688 = vunpack.c.l.b16 %v1543
        %v1689 = vunpack.c.l.b16 %v1544
        %v1690 = vunpack.c.l.b16 %v1545
        %v1691 = vpack.c.b16 %v1688, %v1687
        %v1692 = vpack.c.b16 %v1690, %v1689
        %v1696 = vsel %vm421, %v1610, 0
        %v1699 = vsel %vm421, %v1619, 0
        %v1702 = vsel %vm421, %v1628, 0
        %v1705 = vsel %vm421, %v1637, 0
        %v1708 = vsel %vm421, %v1646, 0
        %v1711 = vsel %vm421, %v1655, 0
        %v1714 = vsel %vm421, %v1664, 0
        %v1717 = vsel %vm421, %v1673, 0
        %v1720 = vsel %vm421, %v1682, 0
        %1722 = vmatpush.bf16.msra.mxu0 0
        %1723 = vmatpush.bf16.msra.mxu0 0
        %1724 = vmatpush.bf16.msra.mxu0 0
        %1725 = vmatpush.bf16.msra.mxu0 0
        %1726 = vmatpush.bf16.msra.mxu0 0
        %1727 = vmatpush.bf16.msra.mxu0 0
        %1728 = vmatpush.bf16.msra.mxu0 %v1692
        %1729 = vmatpush.bf16.msra.mxu0 %v1691
        %1730 = vmatmul.bf16.gmra.mxu0 %v1696
        %v1731 = vpop.f32.mrf.mxu0
        %v1732 = vadd.f32 0.0, %v1731
        %v1733 = vpop.f32.mrf.mxu0
        %v1734 = vadd.f32 0.0, %v1733
        %1735 = vmatmul.bf16.gmra.mxu0 %v1699
        %v1736 = vpop.f32.mrf.mxu0
        %v1737 = vadd.f32 0.0, %v1736
        %v1738 = vpop.f32.mrf.mxu0
        %v1739 = vadd.f32 0.0, %v1738
        %1740 = vmatmul.bf16.gmra.mxu0 %v1702
        %v1741 = vpop.f32.mrf.mxu0
        %v1742 = vadd.f32 0.0, %v1741
        %v1743 = vpop.f32.mrf.mxu0
        %v1744 = vadd.f32 0.0, %v1743
        %1745 = vmatmul.bf16.gmra.mxu0 %v1705
        %v1746 = vpop.f32.mrf.mxu0
        %v1747 = vadd.f32 0.0, %v1746
        %v1748 = vpop.f32.mrf.mxu0
        %v1749 = vadd.f32 0.0, %v1748
        %1750 = vmatmul.bf16.gmra.mxu0 %v1708
        %v1751 = vpop.f32.mrf.mxu0
        %v1752 = vadd.f32 0.0, %v1751
        %v1753 = vpop.f32.mrf.mxu0
        %v1754 = vadd.f32 0.0, %v1753
        %1755 = vmatmul.bf16.gmra.mxu0 %v1711
        %v1756 = vpop.f32.mrf.mxu0
        %v1757 = vadd.f32 0.0, %v1756
        %v1758 = vpop.f32.mrf.mxu0
        %v1759 = vadd.f32 0.0, %v1758
        %1760 = vmatmul.bf16.gmra.mxu0 %v1714
        %v1761 = vpop.f32.mrf.mxu0
        %v1762 = vadd.f32 0.0, %v1761
        %v1763 = vpop.f32.mrf.mxu0
        %v1764 = vadd.f32 0.0, %v1763
        %1765 = vmatmul.bf16.gmra.mxu0 %v1717
        %v1766 = vpop.f32.mrf.mxu0
        %v1767 = vadd.f32 0.0, %v1766
        %v1768 = vpop.f32.mrf.mxu0
        %v1769 = vadd.f32 0.0, %v1768
        %1770 = vmatmul.bf16.gmra.mxu0 %v1720
        %v1771 = vpop.f32.mrf.mxu0
        %v1772 = vadd.f32 0.0, %v1771
        %v1773 = vpop.f32.mrf.mxu0
        %v1774 = vadd.f32 0.0, %v1773
        %1775 = vdwg.mxu0
        %v1776 = vadd.f32 %v1505, %v1732
        %v1777 = vadd.f32 %v1506, %v1734
        %v1778 = vadd.f32 %v1507, %v1737
        %v1779 = vadd.f32 %v1508, %v1739
        %v1780 = vadd.f32 %v1509, %v1742
        %v1781 = vadd.f32 %v1510, %v1744
        %v1782 = vadd.f32 %v1511, %v1747
        %v1783 = vadd.f32 %v1512, %v1749
        %v1784 = vadd.f32 %v1513, %v1752
        %v1785 = vadd.f32 %v1514, %v1754
        %v1786 = vadd.f32 %v1515, %v1757
        %v1787 = vadd.f32 %v1516, %v1759
        %v1788 = vadd.f32 %v1517, %v1762
        %v1789 = vadd.f32 %v1518, %v1764
        %v1790 = vadd.f32 %v1519, %v1767
        %v1791 = vadd.f32 %v1520, %v1769
        %v1792 = vadd.f32 %v1521, %v1772
        %v1793 = vadd.f32 %v1522, %v1774
        %v1794 = vld [vmem:[#allocation2 + $0x14] sm:$0xc]
        %v1795 = vld [vmem:[%s1 + $0x70] sm:$0xf]
        %v1796 = vld [vmem:[%s1 + $0x74] sm:$0xf]
        %v1797 = vld [vmem:[%s1 + $0x78] sm:$0xf]
        %v1798 = vld [vmem:[%s1 + $0x7c] sm:$0xf]
        %v1800 = vunpack.c.l.b16 %v1794
        %v1801 = vpack.c.b16 %v1566, %v1800
        %vm1802 = vcmask 1045504
        %v1803 = vrot.slane %v1801, 2
        %v1804 = vrot.slane %v1585, 2
        %v1805 = vsel %vm1802, %v1803, %v1804
        %v1806 = vrot.slane %v1586, 2
        %v1807 = vsel %vm1802, %v1804, %v1806
        %v1808 = vrot.slane %v1587, 2
        %v1809 = vsel %vm1802, %v1806, %v1808
        %v1810 = vrot.slane %v1588, 2
        %v1811 = vsel %vm1802, %v1808, %v1810
        %v1812 = vrot.slane %v1589, 2
        %v1813 = vsel %vm1802, %v1810, %v1812
        %v1814 = vrot.slane %v1590, 2
        %v1815 = vsel %vm1802, %v1812, %v1814
        %v1816 = vrot.slane %v1591, 2
        %v1817 = vsel %vm1802, %v1814, %v1816
        %v1818 = vrot.slane %v1592, 2
        %v1819 = vsel %vm1802, %v1816, %v1818
        %v1820 = vrot.slane %v1593, 2
        %v1821 = vsel %vm1802, %v1818, %v1820
        %v1826 = vunpack.c.l.b16 %v1795
        %v1827 = vunpack.c.l.b16 %v1796
        %v1828 = vunpack.c.l.b16 %v1797
        %v1829 = vunpack.c.l.b16 %v1798
        %v1830 = vpack.c.b16 %v1827, %v1826
        %v1831 = vpack.c.b16 %v1829, %v1828
        %v1835 = vsel %vm421, %v1805, 0
        %v1838 = vsel %vm421, %v1807, 0
        %v1841 = vsel %vm421, %v1809, 0
        %v1844 = vsel %vm421, %v1811, 0
        %v1847 = vsel %vm421, %v1813, 0
        %v1850 = vsel %vm421, %v1815, 0
        %v1853 = vsel %vm421, %v1817, 0
        %v1856 = vsel %vm421, %v1819, 0
        %v1859 = vsel %vm421, %v1821, 0
        %1861 = vmatpush.bf16.msra.mxu0 0
        %1862 = vmatpush.bf16.msra.mxu0 0
        %1863 = vmatpush.bf16.msra.mxu0 0
        %1864 = vmatpush.bf16.msra.mxu0 0
        %1865 = vmatpush.bf16.msra.mxu0 0
        %1866 = vmatpush.bf16.msra.mxu0 0
        %1867 = vmatpush.bf16.msra.mxu0 %v1831
        %1868 = vmatpush.bf16.msra.mxu0 %v1830
        %1869 = vmatmul.bf16.gmra.mxu0 %v1835
        %v1870 = vpop.f32.mrf.mxu0
        %v1871 = vadd.f32 0.0, %v1870
        %v1872 = vpop.f32.mrf.mxu0
        %v1873 = vadd.f32 0.0, %v1872
        %1874 = vmatmul.bf16.gmra.mxu0 %v1838
        %v1875 = vpop.f32.mrf.mxu0
        %v1876 = vadd.f32 0.0, %v1875
        %v1877 = vpop.f32.mrf.mxu0
        %v1878 = vadd.f32 0.0, %v1877
        %1879 = vmatmul.bf16.gmra.mxu0 %v1841
        %v1880 = vpop.f32.mrf.mxu0
        %v1881 = vadd.f32 0.0, %v1880
        %v1882 = vpop.f32.mrf.mxu0
        %v1883 = vadd.f32 0.0, %v1882
        %1884 = vmatmul.bf16.gmra.mxu0 %v1844
        %v1885 = vpop.f32.mrf.mxu0
        %v1886 = vadd.f32 0.0, %v1885
        %v1887 = vpop.f32.mrf.mxu0
        %v1888 = vadd.f32 0.0, %v1887
        %1889 = vmatmul.bf16.gmra.mxu0 %v1847
        %v1890 = vpop.f32.mrf.mxu0
        %v1891 = vadd.f32 0.0, %v1890
        %v1892 = vpop.f32.mrf.mxu0
        %v1893 = vadd.f32 0.0, %v1892
        %1894 = vmatmul.bf16.gmra.mxu0 %v1850
        %v1895 = vpop.f32.mrf.mxu0
        %v1896 = vadd.f32 0.0, %v1895
        %v1897 = vpop.f32.mrf.mxu0
        %v1898 = vadd.f32 0.0, %v1897
        %1899 = vmatmul.bf16.gmra.mxu0 %v1853
        %v1900 = vpop.f32.mrf.mxu0
        %v1901 = vadd.f32 0.0, %v1900
        %v1902 = vpop.f32.mrf.mxu0
        %v1903 = vadd.f32 0.0, %v1902
        %1904 = vmatmul.bf16.gmra.mxu0 %v1856
        %v1905 = vpop.f32.mrf.mxu0
        %v1906 = vadd.f32 0.0, %v1905
        %v1907 = vpop.f32.mrf.mxu0
        %v1908 = vadd.f32 0.0, %v1907
        %1909 = vmatmul.bf16.gmra.mxu0 %v1859
        %v1910 = vpop.f32.mrf.mxu0
        %v1911 = vadd.f32 0.0, %v1910
        %v1912 = vpop.f32.mrf.mxu0
        %v1913 = vadd.f32 0.0, %v1912
        %1914 = vdwg.mxu0
        %v1915 = vadd.f32 %v1776, %v1871
        %v1916 = vadd.f32 %v1777, %v1873
        %v1917 = vadd.f32 %v1778, %v1876
        %v1918 = vadd.f32 %v1779, %v1878
        %v1919 = vadd.f32 %v1780, %v1881
        %v1920 = vadd.f32 %v1781, %v1883
        %v1921 = vadd.f32 %v1782, %v1886
        %v1922 = vadd.f32 %v1783, %v1888
        %v1923 = vadd.f32 %v1784, %v1891
        %v1924 = vadd.f32 %v1785, %v1893
        %v1925 = vadd.f32 %v1786, %v1896
        %v1926 = vadd.f32 %v1787, %v1898
        %v1927 = vadd.f32 %v1788, %v1901
        %v1928 = vadd.f32 %v1789, %v1903
        %v1929 = vadd.f32 %v1790, %v1906
        %v1930 = vadd.f32 %v1791, %v1908
        %v1931 = vadd.f32 %v1792, %v1911
        %v1932 = vadd.f32 %v1793, %v1913
        %v1933 = vld [vmem:[#allocation2 + $0x5c] sm:$0x7]
        %v1934 = vld [vmem:[%s1 + $0x80] sm:$0xf]
        %v1935 = vld [vmem:[%s1 + $0x84] sm:$0xf]
        %v1936 = vld [vmem:[%s1 + $0x88] sm:$0xf]
        %v1937 = vld [vmem:[%s1 + $0x8c] sm:$0xf]
        %v1939 = vunpack.c.l.b16 %v1933
        %v1940 = vpack.c.b16 %v1939, %v1939
        %vm1941 = vsmask.f32 5376
        %v1943 = vshrl.u32 %v1801, 16
        %v1945 = vrot.slane %v1943, 2
        %v1946 = vshll.u32 %v1801, 16
        %v1948 = vrot.slane %v1946, 3
        %v1949 = vor.u32 %v1945, %v1948
        %v1950 = vrot.slane %v1603, 2
        %v1951 = vrot.slane %v1606, 3
        %v1952 = vor.u32 %v1950, %v1951
        %v1953 = vsel %vm1941, %v1949, %v1952
        %v1954 = vrot.slane %v1612, 2
        %v1955 = vrot.slane %v1615, 3
        %v1956 = vor.u32 %v1954, %v1955
        %v1957 = vsel %vm1941, %v1952, %v1956
        %v1958 = vrot.slane %v1621, 2
        %v1959 = vrot.slane %v1624, 3
        %v1960 = vor.u32 %v1958, %v1959
        %v1961 = vsel %vm1941, %v1956, %v1960
        %v1962 = vrot.slane %v1630, 2
        %v1963 = vrot.slane %v1633, 3
        %v1964 = vor.u32 %v1962, %v1963
        %v1965 = vsel %vm1941, %v1960, %v1964
        %v1966 = vrot.slane %v1639, 2
        %v1967 = vrot.slane %v1642, 3
        %v1968 = vor.u32 %v1966, %v1967
        %v1969 = vsel %vm1941, %v1964, %v1968
        %v1970 = vrot.slane %v1648, 2
        %v1971 = vrot.slane %v1651, 3
        %v1972 = vor.u32 %v1970, %v1971
        %v1973 = vsel %vm1941, %v1968, %v1972
        %v1974 = vrot.slane %v1657, 2
        %v1975 = vrot.slane %v1660, 3
        %v1976 = vor.u32 %v1974, %v1975
        %v1977 = vsel %vm1941, %v1972, %v1976
        %v1978 = vrot.slane %v1666, 2
        %v1979 = vrot.slane %v1669, 3
        %v1980 = vor.u32 %v1978, %v1979
        %v1981 = vsel %vm1941, %v1976, %v1980
        %v1983 = vshrl.u32 %v1940, 16
        %v1985 = vrot.slane %v1983, 2
        %v1986 = vshll.u32 %v1940, 16
        %v1988 = vrot.slane %v1986, 3
        %v1989 = vor.u32 %v1985, %v1988
        %v1990 = vsel %vm1941, %v1980, %v1989
        %v1995 = vunpack.c.l.b16 %v1934
        %v1996 = vunpack.c.l.b16 %v1935
        %v1997 = vunpack.c.l.b16 %v1936
        %v1998 = vunpack.c.l.b16 %v1937
        %v1999 = vpack.c.b16 %v1996, %v1995
        %v2000 = vpack.c.b16 %v1998, %v1997
        %v2004 = vsel %vm421, %v1953, 0
        %v2007 = vsel %vm421, %v1957, 0
        %v2010 = vsel %vm421, %v1961, 0
        %v2013 = vsel %vm421, %v1965, 0
        %v2016 = vsel %vm421, %v1969, 0
        %v2019 = vsel %vm421, %v1973, 0
        %v2022 = vsel %vm421, %v1977, 0
        %v2025 = vsel %vm421, %v1981, 0
        %v2028 = vsel %vm421, %v1990, 0
        %2030 = vmatpush.bf16.msra.mxu0 0
        %2031 = vmatpush.bf16.msra.mxu0 0
        %2032 = vmatpush.bf16.msra.mxu0 0
        %2033 = vmatpush.bf16.msra.mxu0 0
        %2034 = vmatpush.bf16.msra.mxu0 0
        %2035 = vmatpush.bf16.msra.mxu0 0
        %2036 = vmatpush.bf16.msra.mxu0 %v2000
        %2037 = vmatpush.bf16.msra.mxu0 %v1999
        %2038 = vmatmul.bf16.gmra.mxu0 %v2004
        %v2039 = vpop.f32.mrf.mxu0
        %v2040 = vadd.f32 0.0, %v2039
        %v2041 = vpop.f32.mrf.mxu0
        %v2042 = vadd.f32 0.0, %v2041
        %2043 = vmatmul.bf16.gmra.mxu0 %v2007
        %v2044 = vpop.f32.mrf.mxu0
        %v2045 = vadd.f32 0.0, %v2044
        %v2046 = vpop.f32.mrf.mxu0
        %v2047 = vadd.f32 0.0, %v2046
        %2048 = vmatmul.bf16.gmra.mxu0 %v2010
        %v2049 = vpop.f32.mrf.mxu0
        %v2050 = vadd.f32 0.0, %v2049
        %v2051 = vpop.f32.mrf.mxu0
        %v2052 = vadd.f32 0.0, %v2051
        %2053 = vmatmul.bf16.gmra.mxu0 %v2013
        %v2054 = vpop.f32.mrf.mxu0
        %v2055 = vadd.f32 0.0, %v2054
        %v2056 = vpop.f32.mrf.mxu0
        %v2057 = vadd.f32 0.0, %v2056
        %2058 = vmatmul.bf16.gmra.mxu0 %v2016
        %v2059 = vpop.f32.mrf.mxu0
        %v2060 = vadd.f32 0.0, %v2059
        %v2061 = vpop.f32.mrf.mxu0
        %v2062 = vadd.f32 0.0, %v2061
        %2063 = vmatmul.bf16.gmra.mxu0 %v2019
        %v2064 = vpop.f32.mrf.mxu0
        %v2065 = vadd.f32 0.0, %v2064
        %v2066 = vpop.f32.mrf.mxu0
        %v2067 = vadd.f32 0.0, %v2066
        %2068 = vmatmul.bf16.gmra.mxu0 %v2022
        %v2069 = vpop.f32.mrf.mxu0
        %v2070 = vadd.f32 0.0, %v2069
        %v2071 = vpop.f32.mrf.mxu0
        %v2072 = vadd.f32 0.0, %v2071
        %2073 = vmatmul.bf16.gmra.mxu0 %v2025
        %v2074 = vpop.f32.mrf.mxu0
        %v2075 = vadd.f32 0.0, %v2074
        %v2076 = vpop.f32.mrf.mxu0
        %v2077 = vadd.f32 0.0, %v2076
        %2078 = vmatmul.bf16.gmra.mxu0 %v2028
        %v2079 = vpop.f32.mrf.mxu0
        %v2080 = vadd.f32 0.0, %v2079
        %v2081 = vpop.f32.mrf.mxu0
        %v2082 = vadd.f32 0.0, %v2081
        %2083 = vdwg.mxu0
        %v2084 = vadd.f32 %v1915, %v2040
        %v2085 = vadd.f32 %v1916, %v2042
        %v2086 = vadd.f32 %v1917, %v2045
        %v2087 = vadd.f32 %v1918, %v2047
        %v2088 = vadd.f32 %v1919, %v2050
        %v2089 = vadd.f32 %v1920, %v2052
        %v2090 = vadd.f32 %v1921, %v2055
        %v2091 = vadd.f32 %v1922, %v2057
        %v2092 = vadd.f32 %v1923, %v2060
        %v2093 = vadd.f32 %v1924, %v2062
        %v2094 = vadd.f32 %v1925, %v2065
        %v2095 = vadd.f32 %v1926, %v2067
        %v2096 = vadd.f32 %v1927, %v2070
        %v2097 = vadd.f32 %v1928, %v2072
        %v2098 = vadd.f32 %v1929, %v2075
        %v2099 = vadd.f32 %v1930, %v2077
        %v2100 = vadd.f32 %v1931, %v2080
        %v2101 = vadd.f32 %v1932, %v2082
        %v2102 = vld [vmem:[%s2] sm:$0xff]
        %v2103 = vld [vmem:[%s2 + $0x8] sm:$0xff]
        %v2104 = vld [vmem:[%s2 + $0x10] sm:$0xff]
        %v2105 = vld [vmem:[%s2 + $0x18] sm:$0xff]
        %v2106 = vld [vmem:[%s2 + $0x20] sm:$0xff]
        %v2107 = vld [vmem:[%s2 + $0x28] sm:$0xff]
        %v2108 = vld [vmem:[%s2 + $0x30] sm:$0xff]
        %v2109 = vld [vmem:[%s2 + $0x38] sm:$0xff]
        %v2110 = vld [vmem:[%s2 + $0x40] sm:$0xff]
        %v2111 = vld [vmem:[%s2 + $0x48] sm:$0xff]
        %v2112 = vld [vmem:[%s2 + $0x50] sm:$0xff]
        %v2113 = vld [vmem:[%s2 + $0x58] sm:$0xff]
        %v2114 = vld [vmem:[%s2 + $0x60] sm:$0xff]
        %v2115 = vld [vmem:[%s2 + $0x68] sm:$0xff]
        %v2116 = vld [vmem:[%s2 + $0x70] sm:$0xff]
        %v2117 = vld [vmem:[%s2 + $0x78] sm:$0xff]
        %v2118 = vld [vmem:[%s2 + $0x80] sm:$0xff]
        %v2119 = vld [vmem:[%s2 + $0x88] sm:$0xff]
        %2121 = vset.pattern.permute.xlu0 0
        %2122 = vperm.xlu0 %2121, %v2102
        %v2123 = vpop.permute.xlu0 %2122
        %2126 = vset.pattern.permute.xlu0 0
        %2127 = vperm.xlu0 %2126, %v2103
        %v2128 = vpop.permute.xlu0 %2127
        %2131 = vset.pattern.permute.xlu0 0
        %2132 = vperm.xlu0 %2131, %v2104
        %v2133 = vpop.permute.xlu0 %2132
        %2136 = vset.pattern.permute.xlu0 0
        %2137 = vperm.xlu0 %2136, %v2105
        %v2138 = vpop.permute.xlu0 %2137
        %2141 = vset.pattern.permute.xlu0 0
        %2142 = vperm.xlu0 %2141, %v2106
        %v2143 = vpop.permute.xlu0 %2142
        %2146 = vset.pattern.permute.xlu0 0
        %2147 = vperm.xlu0 %2146, %v2107
        %v2148 = vpop.permute.xlu0 %2147
        %2151 = vset.pattern.permute.xlu0 0
        %2152 = vperm.xlu0 %2151, %v2108
        %v2153 = vpop.permute.xlu0 %2152
        %2156 = vset.pattern.permute.xlu0 0
        %2157 = vperm.xlu0 %2156, %v2109
        %v2158 = vpop.permute.xlu0 %2157
        %2161 = vset.pattern.permute.xlu0 0
        %2162 = vperm.xlu0 %2161, %v2110
        %v2163 = vpop.permute.xlu0 %2162
        %2166 = vset.pattern.permute.xlu0 0
        %2167 = vperm.xlu0 %2166, %v2111
        %v2168 = vpop.permute.xlu0 %2167
        %2171 = vset.pattern.permute.xlu0 0
        %2172 = vperm.xlu0 %2171, %v2112
        %v2173 = vpop.permute.xlu0 %2172
        %2176 = vset.pattern.permute.xlu0 0
        %2177 = vperm.xlu0 %2176, %v2113
        %v2178 = vpop.permute.xlu0 %2177
        %2181 = vset.pattern.permute.xlu0 0
        %2182 = vperm.xlu0 %2181, %v2114
        %v2183 = vpop.permute.xlu0 %2182
        %2186 = vset.pattern.permute.xlu0 0
        %2187 = vperm.xlu0 %2186, %v2115
        %v2188 = vpop.permute.xlu0 %2187
        %2191 = vset.pattern.permute.xlu0 0
        %2192 = vperm.xlu0 %2191, %v2116
        %v2193 = vpop.permute.xlu0 %2192
        %2196 = vset.pattern.permute.xlu0 0
        %2197 = vperm.xlu0 %2196, %v2117
        %v2198 = vpop.permute.xlu0 %2197
        %2201 = vset.pattern.permute.xlu0 0
        %2202 = vperm.xlu0 %2201, %v2118
        %v2203 = vpop.permute.xlu0 %2202
        %2206 = vset.pattern.permute.xlu0 0
        %2207 = vperm.xlu0 %2206, %v2119
        %v2208 = vpop.permute.xlu0 %2207
        %v2210 = vmul.f32 %v2084, %v2123
        %v2211 = vmul.f32 %v2085, %v2128
        %v2212 = vmul.f32 %v2086, %v2133
        %v2213 = vmul.f32 %v2087, %v2138
        %v2214 = vmul.f32 %v2088, %v2143
        %v2215 = vmul.f32 %v2089, %v2148
        %v2216 = vmul.f32 %v2090, %v2153
        %v2217 = vmul.f32 %v2091, %v2158
        %v2218 = vmul.f32 %v2092, %v2163
        %v2219 = vmul.f32 %v2093, %v2168
        %v2220 = vmul.f32 %v2094, %v2173
        %v2221 = vmul.f32 %v2095, %v2178
        %v2222 = vmul.f32 %v2096, %v2183
        %v2223 = vmul.f32 %v2097, %v2188
        %v2224 = vmul.f32 %v2098, %v2193
        %v2225 = vmul.f32 %v2099, %v2198
        %v2226 = vmul.f32 %v2100, %v2203
        %v2227 = vmul.f32 %v2101, %v2208
        %v2228 = vpack.c.bf16 %v2210, %v2210
        %v2229 = vpack.c.bf16 %v2211, %v2211
        %v2230 = vpack.c.bf16 %v2212, %v2212
        %v2231 = vpack.c.bf16 %v2213, %v2213
        %v2232 = vpack.c.bf16 %v2214, %v2214
        %v2233 = vpack.c.bf16 %v2215, %v2215
        %v2234 = vpack.c.bf16 %v2216, %v2216
        %v2235 = vpack.c.bf16 %v2217, %v2217
        %v2236 = vpack.c.bf16 %v2218, %v2218
        %v2237 = vpack.c.bf16 %v2219, %v2219
        %v2238 = vpack.c.bf16 %v2220, %v2220
        %v2239 = vpack.c.bf16 %v2221, %v2221
        %v2240 = vpack.c.bf16 %v2222, %v2222
        %v2241 = vpack.c.bf16 %v2223, %v2223
        %v2242 = vpack.c.bf16 %v2224, %v2224
        %v2243 = vpack.c.bf16 %v2225, %v2225
        %v2244 = vpack.c.bf16 %v2226, %v2226
        %v2245 = vpack.c.bf16 %v2227, %v2227
        %2246 = vst.msk [vmem:[%s283] sm:$0xf] %vm310, %v2228
        %2247 = vst.msk [vmem:[%s283 + $0x4] sm:$0xf] %vm310, %v2229
        %2248 = vst.msk [vmem:[%s283 + $0x8] sm:$0xf] %vm310, %v2230
        %2249 = vst.msk [vmem:[%s283 + $0xc] sm:$0xf] %vm310, %v2231
        %2250 = vst.msk [vmem:[%s283 + $0x10] sm:$0xf] %vm310, %v2232
        %2251 = vst.msk [vmem:[%s283 + $0x14] sm:$0xf] %vm310, %v2233
        %2252 = vst.msk [vmem:[%s283 + $0x18] sm:$0xf] %vm310, %v2234
        %2253 = vst.msk [vmem:[%s283 + $0x1c] sm:$0xf] %vm310, %v2235
        %2254 = vst.msk [vmem:[%s283 + $0x20] sm:$0xf] %vm310, %v2236
        %2255 = vst.msk [vmem:[%s283 + $0x24] sm:$0xf] %vm310, %v2237
        %2256 = vst.msk [vmem:[%s283 + $0x28] sm:$0xf] %vm310, %v2238
        %2257 = vst.msk [vmem:[%s283 + $0x2c] sm:$0xf] %vm310, %v2239
        %2258 = vst.msk [vmem:[%s283 + $0x30] sm:$0xf] %vm310, %v2240
        %2259 = vst.msk [vmem:[%s283 + $0x34] sm:$0xf] %vm310, %v2241
        %2260 = vst.msk [vmem:[%s283 + $0x38] sm:$0xf] %vm310, %v2242
        %2261 = vst.msk [vmem:[%s283 + $0x3c] sm:$0xf] %vm310, %v2243
        %2262 = vst.msk [vmem:[%s283 + $0x40] sm:$0xf] %vm310, %v2244
        %2263 = vst.msk [vmem:[%s283 + $0x44] sm:$0xf] %vm310, %v2245
        %v2264 = vsel %vm421, %v2210, 0.0
        %v2265 = vsel %vm421, %v2211, 0.0
        %v2266 = vadd.f32 %v2264, %v2265
        %v2267 = vsel %vm421, %v2212, 0.0
        %v2268 = vadd.f32 %v2266, %v2267
        %v2269 = vsel %vm421, %v2213, 0.0
        %v2270 = vadd.f32 %v2268, %v2269
        %v2271 = vsel %vm421, %v2214, 0.0
        %v2272 = vadd.f32 %v2270, %v2271
        %v2273 = vsel %vm421, %v2215, 0.0
        %v2274 = vadd.f32 %v2272, %v2273
        %v2275 = vsel %vm421, %v2216, 0.0
        %v2276 = vadd.f32 %v2274, %v2275
        %v2277 = vsel %vm421, %v2217, 0.0
        %v2278 = vadd.f32 %v2276, %v2277
        %v2279 = vsel %vm421, %v2218, 0.0
        %v2280 = vadd.f32 %v2278, %v2279
        %v2281 = vsel %vm421, %v2219, 0.0
        %v2282 = vadd.f32 %v2280, %v2281
        %v2283 = vsel %vm421, %v2220, 0.0
        %v2284 = vadd.f32 %v2282, %v2283
        %v2285 = vsel %vm421, %v2221, 0.0
        %v2286 = vadd.f32 %v2284, %v2285
        %v2287 = vsel %vm421, %v2222, 0.0
        %v2288 = vadd.f32 %v2286, %v2287
        %v2289 = vsel %vm421, %v2223, 0.0
        %v2290 = vadd.f32 %v2288, %v2289
        %v2291 = vsel %vm421, %v2224, 0.0
        %v2292 = vadd.f32 %v2290, %v2291
        %v2293 = vsel %vm421, %v2225, 0.0
        %v2294 = vadd.f32 %v2292, %v2293
        %v2295 = vsel %vm421, %v2226, 0.0
        %v2296 = vadd.f32 %v2294, %v2295
        %v2297 = vsel %vm421, %v2227, 0.0
        %v2298 = vadd.f32 %v2296, %v2297
        %v2299 = vrot.slane %v2298, 4
        %v2300 = vadd.f32 %v2298, %v2299
        %v2301 = vrot.slane %v2300, 2
        %v2302 = vadd.f32 %v2300, %v2301
        %v2303 = vrot.slane %v2302, 1
        %v2304 = vadd.f32 %v2302, %v2303
        %vm2305 = vcmask 253952
        %2306 = vst.msk [vmem:[%s259] sm:$0x1] %vm2305, %v2304
        %v2307 = vmul.f32 %v2210, %v2210
        %v2308 = vmul.f32 %v2211, %v2211
        %v2309 = vmul.f32 %v2212, %v2212
        %v2310 = vmul.f32 %v2213, %v2213
        %v2311 = vmul.f32 %v2214, %v2214
        %v2312 = vmul.f32 %v2215, %v2215
        %v2313 = vmul.f32 %v2216, %v2216
        %v2314 = vmul.f32 %v2217, %v2217
        %v2315 = vmul.f32 %v2218, %v2218
        %v2316 = vmul.f32 %v2219, %v2219
        %v2317 = vmul.f32 %v2220, %v2220
        %v2318 = vmul.f32 %v2221, %v2221
        %v2319 = vmul.f32 %v2222, %v2222
        %v2320 = vmul.f32 %v2223, %v2223
        %v2321 = vmul.f32 %v2224, %v2224
        %v2322 = vmul.f32 %v2225, %v2225
        %v2323 = vmul.f32 %v2226, %v2226
        %v2324 = vmul.f32 %v2227, %v2227
        %v2325 = vsel %vm421, %v2307, 0.0
        %v2326 = vsel %vm421, %v2308, 0.0
        %v2327 = vadd.f32 %v2325, %v2326
        %v2328 = vsel %vm421, %v2309, 0.0
        %v2329 = vadd.f32 %v2327, %v2328
        %v2330 = vsel %vm421, %v2310, 0.0
        %v2331 = vadd.f32 %v2329, %v2330
        %v2332 = vsel %vm421, %v2311, 0.0
        %v2333 = vadd.f32 %v2331, %v2332
        %v2334 = vsel %vm421, %v2312, 0.0
        %v2335 = vadd.f32 %v2333, %v2334
        %v2336 = vsel %vm421, %v2313, 0.0
        %v2337 = vadd.f32 %v2335, %v2336
        %v2338 = vsel %vm421, %v2314, 0.0
        %v2339 = vadd.f32 %v2337, %v2338
        %v2340 = vsel %vm421, %v2315, 0.0
        %v2341 = vadd.f32 %v2339, %v2340
        %v2342 = vsel %vm421, %v2316, 0.0
        %v2343 = vadd.f32 %v2341, %v2342
        %v2344 = vsel %vm421, %v2317, 0.0
        %v2345 = vadd.f32 %v2343, %v2344
        %v2346 = vsel %vm421, %v2318, 0.0
        %v2347 = vadd.f32 %v2345, %v2346
        %v2348 = vsel %vm421, %v2319, 0.0
        %v2349 = vadd.f32 %v2347, %v2348
        %v2350 = vsel %vm421, %v2320, 0.0
        %v2351 = vadd.f32 %v2349, %v2350
        %v2352 = vsel %vm421, %v2321, 0.0
        %v2353 = vadd.f32 %v2351, %v2352
        %v2354 = vsel %vm421, %v2322, 0.0
        %v2355 = vadd.f32 %v2353, %v2354
        %v2356 = vsel %vm421, %v2323, 0.0
        %v2357 = vadd.f32 %v2355, %v2356
        %v2358 = vsel %vm421, %v2324, 0.0
        %v2359 = vadd.f32 %v2357, %v2358
        %v2360 = vrot.slane %v2359, 4
        %v2361 = vadd.f32 %v2359, %v2360
        %v2362 = vrot.slane %v2361, 2
        %v2363 = vadd.f32 %v2361, %v2362
        %v2364 = vrot.slane %v2363, 1
        %v2365 = vadd.f32 %v2363, %v2364
        %2366 = vst.msk [vmem:[%s265] sm:$0x1] %vm2305, %v2365
        %p2367 = scmp.lt.s32.totalorder %s27, 1
        %s2368 = scalar_select %p2367, %s27, 1
        %p2369 = scmp.lt.s32.totalorder %s28, 1
        %s2370 = scalar_select %p2369, %s28, 1
        %s2371 = smul.addr %s2370, 18
        %s2372 = smul.addr %s2368, 36
        %s2373 = sadd.s32 %s2371, %s2372
        %s2374 = smul.addr %s2373, 4
        %s2375 = scalar_lea.vmem %s3, %s2374
        %s2376 = sand.u32 %s143, 1
        %s2377 = scalar_lea.sflag [#allocation4], %s2376
        %s2378 = sand.u32 %s143, 1
        %s2379 = scalar_lea.vmem [#allocation3], %s2378
        %s2380 = sand.u32 %s171, 1
        %s2381 = scalar_lea.sflag [#allocation6], %s2380
        %s2382 = sand.u32 %s171, 1
        %s2383 = scalar_lea.vmem [#allocation5], %s2382
        // Predicated region
        $region33: #{tpu_custom_call.1} parent=31 // pred_check
          %p2384 = pneg %p125
        $region34: #{tpu_custom_call.1} parent=31 // pred_check_branch
          %2386 = sbr.rel (%p2384) target = $region36
        $region35: #{tpu_custom_call.1} parent=31 // pred_region
          _
        $region36: #{tpu_custom_call.1} parent=31 // pred_fallthru
          _
        // Predicated region
        $region37: #{tpu_custom_call.1} parent=31 // pred_check
          %p2387 = pneg %p153
        $region38: #{tpu_custom_call.1} parent=31 // pred_check_branch
          %2389 = sbr.rel (%p2387) target = $region40
        $region39: #{tpu_custom_call.1} parent=31 // pred_region
          %2391 = vsyncadd %s2377, 0
          %s2392 = smul.addr %s27, 2
          %s2393 = sadd.s32 %s28, %s2392
          %s2394 = scalar_lea.hbm %s4, %s2393
          %s2396 = sshll.u32 %s2379, 4
          %s2397 = int_to_ptr.vmem [resolvable:$true] %s2396
          %s2398 = sshll.u32 %s2394, 4
          %s2399 = int_to_ptr.hbm [resolvable:$true] %s2398
          %2401 = dma.vmem_to_hbm [thread:$0]  %s2397, 16, %s2399, %s2377
        $region40: #{tpu_custom_call.1} parent=31 // pred_fallthru
          _
        // Predicated region
        $region41: #{tpu_custom_call.1} parent=31 // pred_check
          %p2402 = pneg %p181
        $region42: #{tpu_custom_call.1} parent=31 // pred_check_branch
          %2404 = sbr.rel (%p2402) target = $region44
        $region43: #{tpu_custom_call.1} parent=31 // pred_region
          %2406 = vsyncadd %s2381, 0
          %s2407 = smul.addr %s27, 2
          %s2408 = sadd.s32 %s28, %s2407
          %s2409 = scalar_lea.hbm %s5, %s2408
          %s2411 = sshll.u32 %s2383, 4
          %s2412 = int_to_ptr.vmem [resolvable:$true] %s2411
          %s2413 = sshll.u32 %s2409, 4
          %s2414 = int_to_ptr.hbm [resolvable:$true] %s2413
          %2416 = dma.vmem_to_hbm [thread:$0]  %s2412, 16, %s2414, %s2381
        $region44: #{tpu_custom_call.1} parent=31 // pred_fallthru
          _
      $region32: #{tpu_custom_call.1} parent=5 // pred_fallthru
        _
      %p2417 = scmp.le.s32.totalorder 2, %s18
      // Predicated region
      $region45: #{tpu_custom_call.1} parent=5 // pred_check
        %p2418 = pneg %p2417
      $region46: #{tpu_custom_call.1} parent=5 // pred_check_branch
        %2420 = sbr.rel (%p2418) target = $region48
      $region47: #{tpu_custom_call.1} parent=5 // pred_region
        %s2421 = ssub.s32 %s18, 2
        // Predicated region
        $region49: #{tpu_custom_call.1} parent=47 // pred_check
          %p2422 = pneg %p131
        $region50: #{tpu_custom_call.1} parent=47 // pred_check_branch
          %2424 = sbr.rel (%p2422) target = $region52
        $region51: #{tpu_custom_call.1} parent=47 // pred_region
          %p2425 = scmp.lt.s32.totalorder %s29, 1
          %s2426 = scalar_select %p2425, %s29, 1
          %p2427 = scmp.lt.s32.totalorder %s30, 1
          %s2428 = scalar_select %p2427, %s30, 1
          %s2429 = smul.addr %s2428, 18
          %s2430 = smul.addr %s2426, 36
          %s2431 = sadd.s32 %s2429, %s2430
          %s2432 = smul.addr %s2431, 4
          %s2433 = scalar_lea.vmem %s3, %s2432
        $region52: #{tpu_custom_call.1} parent=47 // pred_fallthru
          _
        // Predicated region
        $region53: #{tpu_custom_call.1} parent=47 // pred_check
          %p2434 = pneg %p159
        $region54: #{tpu_custom_call.1} parent=47 // pred_check_branch
          %2436 = sbr.rel (%p2434) target = $region56
        $region55: #{tpu_custom_call.1} parent=47 // pred_region
          %s2437 = sand.u32 %s144, 1
          %s2438 = scalar_lea.sflag [#allocation4], %s2437
          %s2439 = sand.u32 %s144, 1
          %s2440 = scalar_lea.vmem [#allocation3], %s2439
          %2442 = dma.done %s2438, 16
        $region56: #{tpu_custom_call.1} parent=47 // pred_fallthru
          _
        // Predicated region
        $region57: #{tpu_custom_call.1} parent=47 // pred_check
          %p2443 = pneg %p187
        $region58: #{tpu_custom_call.1} parent=47 // pred_check_branch
          %2445 = sbr.rel (%p2443) target = $region60
        $region59: #{tpu_custom_call.1} parent=47 // pred_region
          %s2446 = sand.u32 %s172, 1
          %s2447 = scalar_lea.sflag [#allocation6], %s2446
          %s2448 = sand.u32 %s172, 1
          %s2449 = scalar_lea.vmem [#allocation5], %s2448
          %2451 = dma.done %s2447, 16
        $region60: #{tpu_custom_call.1} parent=47 // pred_fallthru
          _
      $region48: #{tpu_custom_call.1} parent=5 // pred_fallthru
        _
    $region6: #{tpu_custom_call.1} parent=1 // loop_footer
      %s22 = sadd.s32 1, %s18
    $region7: #{tpu_custom_call.1} parent=1 // loop_footer_branch
      %17 = sbr.rel target = $region3
    $region8: #{tpu_custom_call.1} parent=1 // loop_exit
      _
    %2452 = vsyncpa [#allocation4], 1
    %s2453 = scalar_lea.sflag [#allocation4], 1
    %2454 = vsyncpa %s2453, 1
    %2455 = vsyncpa [#allocation6], 1
    %s2456 = scalar_lea.sflag [#allocation6], 1
    %2457 = vsyncpa %s2456, 1

</llo_original>
